<compile_context>
chip_gen: v5e
topology: v5e:2x2
jax: 0.10.0
libtpu: 0.0.40
codegen_flags: <defaults>
</compile_context>

<pallas_src>
import jax
import jax.numpy as jnp
from jax import lax
from jax.experimental import pallas as pl
from jax.experimental.pallas import tpu as pltpu


# ----------------------------------------------------------------------------
# Pallas kernel: LSTM recurrence fused with online attention pooling
# ----------------------------------------------------------------------------
def _attn_lstm_kernel(
    embeds_ref,   # (L, TB, D)   f32  time-major embedded inputs (one batch tile)
    lengths_ref,  # (TB, 1)      i32  valid lengths
    w_ih_ref,     # (D, 4H)      f32  LSTM input->gates  (gate order i, f, g, o)
    w_hh_ref,     # (H, 4H)      f32  LSTM hidden->gates
    b_ref,        # (1, 4H)      f32  combined bias (b_ih + b_hh)
    attw_ref,     # (1, H)       f32  attention vector
    rep_ref,      # (TB, H)      f32  out: attention-pooled representations
    xproj_ref,    # (L, TB, 4H)  f32  scratch: hoisted input projection
):
    L, TB, D = embeds_ref.shape
    H = w_hh_ref.shape[0]

    # ---- hoisted input projection: one big matmul, off the serial h-chain ----
    x_flat = embeds_ref[...].reshape(L * TB, D)
    xproj = jnp.dot(x_flat, w_ih_ref[...], preferred_element_type=jnp.float32)
    xproj_ref[...] = (xproj + b_ref[...]).reshape(L, TB, 4 * H)

    # loop-invariant values (hoisted out of the unrolled body)
    w_hh = w_hh_ref[...]                       # (H, 4H)
    attw = attw_ref[...]                       # (1, H)
    lengths = lengths_ref[...]                 # (TB, 1) int32

    def step(t, carry):
        h, c, num, den = carry
        # only the recurrent matmul sits on the h_{t-1} -> h_t dependency chain
        gates = xproj_ref[t] + jnp.dot(h, w_hh, preferred_element_type=jnp.float32)
        i_g = jax.nn.sigmoid(gates[:, 0:H])
        f_g = jax.nn.sigmoid(gates[:, H:2 * H])
        g_g = jnp.tanh(gates[:, 2 * H:3 * H])
        o_g = jax.nn.sigmoid(gates[:, 3 * H:4 * H])
        c = f_g * c + i_g * g_g
        h = o_g * jnp.tanh(c)

        # online attention: tanh-bounded score => exp cannot overflow, no max pass;
        # the softmax denominator cancels against the post-mask renormalization.
        score = jnp.tanh(jnp.sum(h * attw, axis=-1, keepdims=True))     # (TB, 1)
        w_t = jnp.exp(score) * (t < lengths).astype(jnp.float32)        # mask folded in
        num = num + w_t * h
        den = den + w_t
        return h, c, num, den

    zeros_bh = jnp.zeros((TB, H), jnp.float32)
    zeros_b1 = jnp.zeros((TB, 1), jnp.float32)
    _, _, num, den = lax.fori_loop(
        0, L, step, (zeros_bh, zeros_bh, zeros_bh, zeros_b1), unroll=True)

    # EUP approximate reciprocal + one Newton step (restores full f32 accuracy)
    inv = pl.reciprocal(den, approx=True)
    inv = inv * (2.0 - den * inv)
    rep_ref[...] = num * inv


# ----------------------------------------------------------------------------
# Wrapper
# ----------------------------------------------------------------------------
def attentional_lstm_forward(x_ids, lengths, params, *, batch_tile=8):
    """x_ids: (B, L) int32 token ids, lengths: (B,) int32 valid lengths."""
    emb_table = params["emb"]                  # (V, D) frozen embeddings
    B, L = x_ids.shape
    D = emb_table.shape[1]
    H = params["w_hh"].shape[0]

    TB = min(batch_tile, B)
    assert B % TB == 0 and TB % 8 == 0, "batch tile must be a multiple of 8"

    # XLA glue: frozen-embedding gather + transpose to time-major.
    # Dropout layers are identity (inference semantics).
    # TODO(synk): fold the embedding gather into the kernel via scalar-prefetch /
    # manual DMA to avoid the HBM round trip of the (L, B, D) activation.
    embeds = jnp.take(emb_table, x_ids, axis=0)             # (B, L, D)
    embeds = jnp.transpose(embeds, (1, 0, 2))               # (L, B, D)
    lengths2d = lengths.astype(jnp.int32).reshape(B, 1)     # (B, 1)

    rep = pl.pallas_call(
        _attn_lstm_kernel,
        out_shape=jax.ShapeDtypeStruct((B, H), jnp.float32),
        grid=(B // TB,),
        in_specs=[
            pl.BlockSpec((L, TB, D), lambda b: (0, b, 0)),      # embeds
            pl.BlockSpec((TB, 1), lambda b: (b, 0)),            # lengths
            pl.BlockSpec((D, 4 * H), lambda b: (0, 0)),         # w_ih
            pl.BlockSpec((H, 4 * H), lambda b: (0, 0)),         # w_hh
            pl.BlockSpec((1, 4 * H), lambda b: (0, 0)),         # bias
            pl.BlockSpec((1, H), lambda b: (0, 0)),             # attention vector
        ],
        out_specs=pl.BlockSpec((TB, H), lambda b: (b, 0)),
        scratch_shapes=[
            pltpu.VMEM((L, TB, 4 * H), jnp.float32),            # hoisted x-projection
        ],
        compiler_params=pltpu.CompilerParams(
            dimension_semantics=("parallel",),                   # megacore on v7x
        ),
    )(embeds, lengths2d, params["w_ih"], params["w_hh"],
      params["b"], params["attw"])

    # hidden2output: O=3 is lane-sparse, so keep this trivial matmul in XLA
    return rep @ params["w_out"] + params["b_out"]


# ----------------------------------------------------------------------------
# Pure-JAX reference (mirrors the PyTorch forward, eval mode)
# ----------------------------------------------------------------------------
def reference_forward(x_ids, lengths, params):
    embeds = jnp.take(params["emb"], x_ids, axis=0)        # (B, L, D)
    B, L, D = embeds.shape
    H = params["w_hh"].shape[0]
    h = jnp.zeros((B, H), jnp.float32)
    c = jnp.zeros((B, H), jnp.float32)
    outs = []
    for t in range(L):
        gates = embeds[:, t, :] @ params["w_ih"] + h @ params["w_hh"] + params["b"]
        i_g = jax.nn.sigmoid(gates[:, 0:H])
        f_g = jax.nn.sigmoid(gates[:, H:2 * H])
        g_g = jnp.tanh(gates[:, 2 * H:3 * H])
        o_g = jax.nn.sigmoid(gates[:, 3 * H:4 * H])
        c = f_g * c + i_g * g_g
        h = o_g * jnp.tanh(c)
        outs.append(h)
    lstm_out = jnp.stack(outs, axis=1)                     # (B, L, H)
    scores = jnp.tanh(jnp.einsum("blh,h->bl", lstm_out, params["attw"][0]))
    scores = jax.nn.softmax(scores, axis=-1)
    mask = (jnp.arange(L)[None, :] < lengths[:, None]).astype(jnp.float32)
    masked = scores * mask
    scores = masked / jnp.sum(masked, axis=-1, keepdims=True)
    rep = jnp.sum(lstm_out * scores[:, :, None], axis=1)   # (B, H)
    return rep @ params["w_out"] + params["b_out"]


# ----------------------------------------------------------------------------
# Main
# ----------------------------------------------------------------------------
if __name__ == "__main__":
    VOCAB, D, H, O = 50, 32, 32, 3
    B, L = 16, 8

    key = jax.random.PRNGKey(0)
    keys = jax.random.split(key, 10)
    s = 1.0 / jnp.sqrt(H)

    params = {
        # frozen "pretrained" embedding table (stand-in for the numpy weights)
        "emb": jax.random.normal(keys[0], (VOCAB, D), jnp.float32) * 0.1,
        # nn.LSTM params (gate order i, f, g, o), stored transposed for x @ W
        "w_ih": jax.random.uniform(keys[1], (D, 4 * H), jnp.float32, -s, s),
        "w_hh": jax.random.uniform(keys[2], (H, 4 * H), jnp.float32, -s, s),
        "b": jax.random.uniform(keys[3], (1, 4 * H), jnp.float32, -s, s)
             + jax.random.uniform(keys[4], (1, 4 * H), jnp.float32, -s, s),
        # Attention(attention_size=H): uniform(-0.005, 0.005)
        "attw": jax.random.uniform(keys[5], (1, H), jnp.float32, -0.005, 0.005),
        # hidden2output Linear
        "w_out": jax.random.uniform(keys[6], (H, O), jnp.float32, -s, s),
        "b_out": jax.random.uniform(keys[7], (1, O), jnp.float32, -s, s),
    }

    x_ids = jax.random.randint(keys[8], (B, L), 0, VOCAB, jnp.int32)
    # all lengths >= 1, several equal to L (matches PyTorch Attention.get_mask use)
    lengths = jnp.array([8, 5, 3, 8, 7, 2, 6, 8, 1, 4, 8, 5, 3, 7, 6, 8], jnp.int32)

    logits = attentional_lstm_forward(x_ids, lengths, params)
    logits = jax.block_until_ready(logits)

    ref = reference_forward(x_ids, lengths, params)
    assert logits.shape == (B, O)
    assert jnp.allclose(logits, ref, atol=1e-4, rtol=1e-4), (logits, ref)

    print("KERNEL_OK")
</pallas_src>

<mosaic_0001>
module attributes {stable_mosaic.version = 11 : i64} {
  func.func @_attn_lstm_kernel(%arg0: i32, %arg1: memref<8x8x32xf32, #tpu.memory_space<vmem>>, %arg2: memref<8x1xi32, #tpu.memory_space<vmem>>, %arg3: memref<32x128xf32, #tpu.memory_space<vmem>>, %arg4: memref<32x128xf32, #tpu.memory_space<vmem>>, %arg5: memref<1x128xf32, #tpu.memory_space<vmem>>, %arg6: memref<1x32xf32, #tpu.memory_space<vmem>>, %arg7: memref<8x32xf32, #tpu.memory_space<vmem>>, %arg8: memref<8x8x128xf32, #tpu.memory_space<vmem>>) attributes {dimension_semantics = [#tpu.dimension_semantics<parallel>], iteration_bounds = array<i64: 2>, scalar_prefetch = 0 : i64, scratch_operands = 1 : i64, tpu.core_type = #tpu.core_type<tc>, window_params = [{transform_indices = @transform_0, window_bounds = array<i64: 8, 8, 32>}, {transform_indices = @transform_1, window_bounds = array<i64: 8, 1>}, {pipeline_mode = #tpu.pipeline_mode<synchronous>, transform_indices = @transform_2, window_bounds = array<i64: 32, 128>}, {pipeline_mode = #tpu.pipeline_mode<synchronous>, transform_indices = @transform_3, window_bounds = array<i64: 32, 128>}, {pipeline_mode = #tpu.pipeline_mode<synchronous>, transform_indices = @transform_4, window_bounds = array<i64: 1, 128>}, {pipeline_mode = #tpu.pipeline_mode<synchronous>, transform_indices = @transform_5, window_bounds = array<i64: 1, 32>}, {transform_indices = @transform_6, window_bounds = array<i64: 8, 32>}]} {
    %c0 = arith.constant 0 : index
    %c0_0 = arith.constant 0 : index
    %c0_1 = arith.constant 0 : index
    %0 = vector.load %arg1[%c0, %c0_0, %c0_1] : memref<8x8x32xf32, #tpu.memory_space<vmem>>, vector<8x8x32xf32>
    %1 = vector.shape_cast %0 : vector<8x8x32xf32> to vector<64x32xf32>
    %c0_2 = arith.constant 0 : index
    %c0_3 = arith.constant 0 : index
    %2 = vector.load %arg3[%c0_2, %c0_3] : memref<32x128xf32, #tpu.memory_space<vmem>>, vector<32x128xf32>
    %cst = arith.constant dense<0.000000e+00> : vector<64x128xf32>
    %3 = tpu.matmul %1, %2, %cst {dimension_numbers = #tpu.dot_dimension_numbers<[1], [0], [0], [1], [0, 0, 1, 1], [], []>} : vector<64x32xf32>, vector<32x128xf32>, vector<64x128xf32> -> vector<64x128xf32>
    %c0_4 = arith.constant 0 : index
    %c0_5 = arith.constant 0 : index
    %4 = vector.load %arg5[%c0_4, %c0_5] : memref<1x128xf32, #tpu.memory_space<vmem>>, vector<1x128xf32>
    %5 = vector.broadcast %4 : vector<1x128xf32> to vector<64x128xf32>
    %6 = arith.addf %3, %5 : vector<64x128xf32>
    %7 = vector.shape_cast %6 : vector<64x128xf32> to vector<8x8x128xf32>
    %c0_6 = arith.constant 0 : index
    %c0_7 = arith.constant 0 : index
    %c0_8 = arith.constant 0 : index
    %8 = vector.load %arg8[%c0_6, %c0_7, %c0_8] : memref<8x8x128xf32, #tpu.memory_space<vmem>>, vector<8x8x128xf32>
    tpu.vector_store %arg8[%c0_6, %c0_7, %c0_8], %7 {strides = array<i32>} : memref<8x8x128xf32, #tpu.memory_space<vmem>>, vector<8x8x128xf32>,
    %c0_9 = arith.constant 0 : index
    %c0_10 = arith.constant 0 : index
    %9 = vector.load %arg4[%c0_9, %c0_10] : memref<32x128xf32, #tpu.memory_space<vmem>>, vector<32x128xf32>
    %c0_11 = arith.constant 0 : index
    %c0_12 = arith.constant 0 : index
    %10 = vector.load %arg6[%c0_11, %c0_12] : memref<1x32xf32, #tpu.memory_space<vmem>>, vector<1x32xf32>
    %c0_13 = arith.constant 0 : index
    %c0_14 = arith.constant 0 : index
    %11 = vector.load %arg2[%c0_13, %c0_14] : memref<8x1xi32, #tpu.memory_space<vmem>>, vector<8x1xi32>
    %cst_15 = arith.constant 0.000000e+00 : f32
    %12 = vector.broadcast %cst_15 : f32 to vector<8x32xf32>
    %cst_16 = arith.constant 0.000000e+00 : f32
    %13 = vector.broadcast %cst_16 : f32 to vector<8x1xf32>
    %c0_i32 = arith.constant 0 : i32
    %14 = arith.index_cast %c0_i32 : i32 to index
    %c0_17 = arith.constant 0 : index
    %c0_18 = arith.constant 0 : index
    %15 = vector.load %arg8[%14, %c0_17, %c0_18] : memref<8x8x128xf32, #tpu.memory_space<vmem>>, vector<1x8x128xf32>
    %16 = vector.shape_cast %15 : vector<1x8x128xf32> to vector<8x128xf32>
    %cst_19 = arith.constant dense<0.000000e+00> : vector<8x128xf32>
    %17 = tpu.matmul %12, %9, %cst_19 {dimension_numbers = #tpu.dot_dimension_numbers<[1], [0], [0], [1], [0, 0, 1, 1], [], []>} : vector<8x32xf32>, vector<32x128xf32>, vector<8x128xf32> -> vector<8x128xf32>
    %18 = arith.addf %16, %17 : vector<8x128xf32>
    %19 = vector.extract_strided_slice %18 {offsets = [0, 0], sizes = [8, 32], strides = [1, 1]} : vector<8x128xf32> to vector<8x32xf32>
    %20 = arith.negf %19 : vector<8x32xf32>
    %21 = math.exp %20 : vector<8x32xf32>
    %cst_20 = arith.constant 1.000000e+00 : f32
    %22 = vector.broadcast %cst_20 : f32 to vector<8x32xf32>
    %23 = arith.addf %22, %21 : vector<8x32xf32>
    %24 = arith.divf %22, %23 : vector<8x32xf32>
    %25 = vector.extract_strided_slice %18 {offsets = [0, 32], sizes = [8, 32], strides = [1, 1]} : vector<8x128xf32> to vector<8x32xf32>
    %26 = arith.negf %25 : vector<8x32xf32>
    %27 = math.exp %26 : vector<8x32xf32>
    %cst_21 = arith.constant 1.000000e+00 : f32
    %28 = vector.broadcast %cst_21 : f32 to vector<8x32xf32>
    %29 = arith.addf %28, %27 : vector<8x32xf32>
    %30 = arith.divf %28, %29 : vector<8x32xf32>
    %31 = vector.extract_strided_slice %18 {offsets = [0, 64], sizes = [8, 32], strides = [1, 1]} : vector<8x128xf32> to vector<8x32xf32>
    %32 = math.tanh %31 : vector<8x32xf32>
    %33 = vector.extract_strided_slice %18 {offsets = [0, 96], sizes = [8, 32], strides = [1, 1]} : vector<8x128xf32> to vector<8x32xf32>
    %34 = arith.negf %33 : vector<8x32xf32>
    %35 = math.exp %34 : vector<8x32xf32>
    %cst_22 = arith.constant 1.000000e+00 : f32
    %36 = vector.broadcast %cst_22 : f32 to vector<8x32xf32>
    %37 = arith.addf %36, %35 : vector<8x32xf32>
    %38 = arith.divf %36, %37 : vector<8x32xf32>
    %39 = arith.mulf %30, %12 : vector<8x32xf32>
    %40 = arith.mulf %24, %32 : vector<8x32xf32>
    %41 = arith.addf %39, %40 : vector<8x32xf32>
    %42 = math.tanh %41 : vector<8x32xf32>
    %43 = arith.mulf %38, %42 : vector<8x32xf32>
    %44 = vector.broadcast %10 : vector<1x32xf32> to vector<8x32xf32>
    %45 = arith.mulf %43, %44 : vector<8x32xf32>
    %cst_23 = arith.constant dense<0.000000e+00> : vector<8xf32>
    %46 = vector.multi_reduction <add>, %45, %cst_23 [1] : vector<8x32xf32> to vector<8xf32>
    %47 = vector.shape_cast %46 : vector<8xf32> to vector<8x1xf32>
    %48 = math.tanh %47 : vector<8x1xf32>
    %49 = math.exp %48 : vector<8x1xf32>
    %50 = vector.broadcast %c0_i32 : i32 to vector<8x1xi32>
    %51 = arith.cmpi slt, %50, %11 : vector<8x1xi32>
    %52 = arith.extui %51 : vector<8x1xi1> to vector<8x1xi32>
    %53 = arith.sitofp %52 : vector<8x1xi32> to vector<8x1xf32>
    %54 = arith.mulf %49, %53 : vector<8x1xf32>
    %55 = vector.broadcast %54 : vector<8x1xf32> to vector<8x32xf32>
    %56 = arith.mulf %55, %43 : vector<8x32xf32>
    %57 = arith.addf %12, %56 : vector<8x32xf32>
    %58 = arith.addf %13, %54 : vector<8x1xf32>
    %c1_i32 = arith.constant 1 : i32
    %59 = arith.index_cast %c1_i32 : i32 to index
    %c0_24 = arith.constant 0 : index
    %c0_25 = arith.constant 0 : index
    %60 = vector.load %arg8[%59, %c0_24, %c0_25] : memref<8x8x128xf32, #tpu.memory_space<vmem>>, vector<1x8x128xf32>
    %61 = vector.shape_cast %60 : vector<1x8x128xf32> to vector<8x128xf32>
    %cst_26 = arith.constant dense<0.000000e+00> : vector<8x128xf32>
    %62 = tpu.matmul %43, %9, %cst_26 {dimension_numbers = #tpu.dot_dimension_numbers<[1], [0], [0], [1], [0, 0, 1, 1], [], []>} : vector<8x32xf32>, vector<32x128xf32>, vector<8x128xf32> -> vector<8x128xf32>
    %63 = arith.addf %61, %62 : vector<8x128xf32>
    %64 = vector.extract_strided_slice %63 {offsets = [0, 0], sizes = [8, 32], strides = [1, 1]} : vector<8x128xf32> to vector<8x32xf32>
    %65 = arith.negf %64 : vector<8x32xf32>
    %66 = math.exp %65 : vector<8x32xf32>
    %cst_27 = arith.constant 1.000000e+00 : f32
    %67 = vector.broadcast %cst_27 : f32 to vector<8x32xf32>
    %68 = arith.addf %67, %66 : vector<8x32xf32>
    %69 = arith.divf %67, %68 : vector<8x32xf32>
    %70 = vector.extract_strided_slice %63 {offsets = [0, 32], sizes = [8, 32], strides = [1, 1]} : vector<8x128xf32> to vector<8x32xf32>
    %71 = arith.negf %70 : vector<8x32xf32>
    %72 = math.exp %71 : vector<8x32xf32>
    %cst_28 = arith.constant 1.000000e+00 : f32
    %73 = vector.broadcast %cst_28 : f32 to vector<8x32xf32>
    %74 = arith.addf %73, %72 : vector<8x32xf32>
    %75 = arith.divf %73, %74 : vector<8x32xf32>
    %76 = vector.extract_strided_slice %63 {offsets = [0, 64], sizes = [8, 32], strides = [1, 1]} : vector<8x128xf32> to vector<8x32xf32>
    %77 = math.tanh %76 : vector<8x32xf32>
    %78 = vector.extract_strided_slice %63 {offsets = [0, 96], sizes = [8, 32], strides = [1, 1]} : vector<8x128xf32> to vector<8x32xf32>
    %79 = arith.negf %78 : vector<8x32xf32>
    %80 = math.exp %79 : vector<8x32xf32>
    %cst_29 = arith.constant 1.000000e+00 : f32
    %81 = vector.broadcast %cst_29 : f32 to vector<8x32xf32>
    %82 = arith.addf %81, %80 : vector<8x32xf32>
    %83 = arith.divf %81, %82 : vector<8x32xf32>
    %84 = arith.mulf %75, %41 : vector<8x32xf32>
    %85 = arith.mulf %69, %77 : vector<8x32xf32>
    %86 = arith.addf %84, %85 : vector<8x32xf32>
    %87 = math.tanh %86 : vector<8x32xf32>
    %88 = arith.mulf %83, %87 : vector<8x32xf32>
    %89 = vector.broadcast %10 : vector<1x32xf32> to vector<8x32xf32>
    %90 = arith.mulf %88, %89 : vector<8x32xf32>
    %cst_30 = arith.constant dense<0.000000e+00> : vector<8xf32>
    %91 = vector.multi_reduction <add>, %90, %cst_30 [1] : vector<8x32xf32> to vector<8xf32>
    %92 = vector.shape_cast %91 : vector<8xf32> to vector<8x1xf32>
    %93 = math.tanh %92 : vector<8x1xf32>
    %94 = math.exp %93 : vector<8x1xf32>
    %95 = vector.broadcast %c1_i32 : i32 to vector<8x1xi32>
    %96 = arith.cmpi slt, %95, %11 : vector<8x1xi32>
    %97 = arith.extui %96 : vector<8x1xi1> to vector<8x1xi32>
    %98 = arith.sitofp %97 : vector<8x1xi32> to vector<8x1xf32>
    %99 = arith.mulf %94, %98 : vector<8x1xf32>
    %100 = vector.broadcast %99 : vector<8x1xf32> to vector<8x32xf32>
    %101 = arith.mulf %100, %88 : vector<8x32xf32>
    %102 = arith.addf %57, %101 : vector<8x32xf32>
    %103 = arith.addf %58, %99 : vector<8x1xf32>
    %c2_i32 = arith.constant 2 : i32
    %104 = arith.index_cast %c2_i32 : i32 to index
    %c0_31 = arith.constant 0 : index
    %c0_32 = arith.constant 0 : index
    %105 = vector.load %arg8[%104, %c0_31, %c0_32] : memref<8x8x128xf32, #tpu.memory_space<vmem>>, vector<1x8x128xf32>
    %106 = vector.shape_cast %105 : vector<1x8x128xf32> to vector<8x128xf32>
    %cst_33 = arith.constant dense<0.000000e+00> : vector<8x128xf32>
    %107 = tpu.matmul %88, %9, %cst_33 {dimension_numbers = #tpu.dot_dimension_numbers<[1], [0], [0], [1], [0, 0, 1, 1], [], []>} : vector<8x32xf32>, vector<32x128xf32>, vector<8x128xf32> -> vector<8x128xf32>
    %108 = arith.addf %106, %107 : vector<8x128xf32>
    %109 = vector.extract_strided_slice %108 {offsets = [0, 0], sizes = [8, 32], strides = [1, 1]} : vector<8x128xf32> to vector<8x32xf32>
    %110 = arith.negf %109 : vector<8x32xf32>
    %111 = math.exp %110 : vector<8x32xf32>
    %cst_34 = arith.constant 1.000000e+00 : f32
    %112 = vector.broadcast %cst_34 : f32 to vector<8x32xf32>
    %113 = arith.addf %112, %111 : vector<8x32xf32>
    %114 = arith.divf %112, %113 : vector<8x32xf32>
    %115 = vector.extract_strided_slice %108 {offsets = [0, 32], sizes = [8, 32], strides = [1, 1]} : vector<8x128xf32> to vector<8x32xf32>
    %116 = arith.negf %115 : vector<8x32xf32>
    %117 = math.exp %116 : vector<8x32xf32>
    %cst_35 = arith.constant 1.000000e+00 : f32
    %118 = vector.broadcast %cst_35 : f32 to vector<8x32xf32>
    %119 = arith.addf %118, %117 : vector<8x32xf32>
    %120 = arith.divf %118, %119 : vector<8x32xf32>
    %121 = vector.extract_strided_slice %108 {offsets = [0, 64], sizes = [8, 32], strides = [1, 1]} : vector<8x128xf32> to vector<8x32xf32>
    %122 = math.tanh %121 : vector<8x32xf32>
    %123 = vector.extract_strided_slice %108 {offsets = [0, 96], sizes = [8, 32], strides = [1, 1]} : vector<8x128xf32> to vector<8x32xf32>
    %124 = arith.negf %123 : vector<8x32xf32>
    %125 = math.exp %124 : vector<8x32xf32>
    %cst_36 = arith.constant 1.000000e+00 : f32
    %126 = vector.broadcast %cst_36 : f32 to vector<8x32xf32>
    %127 = arith.addf %126, %125 : vector<8x32xf32>
    %128 = arith.divf %126, %127 : vector<8x32xf32>
    %129 = arith.mulf %120, %86 : vector<8x32xf32>
    %130 = arith.mulf %114, %122 : vector<8x32xf32>
    %131 = arith.addf %129, %130 : vector<8x32xf32>
    %132 = math.tanh %131 : vector<8x32xf32>
    %133 = arith.mulf %128, %132 : vector<8x32xf32>
    %134 = vector.broadcast %10 : vector<1x32xf32> to vector<8x32xf32>
    %135 = arith.mulf %133, %134 : vector<8x32xf32>
    %cst_37 = arith.constant dense<0.000000e+00> : vector<8xf32>
    %136 = vector.multi_reduction <add>, %135, %cst_37 [1] : vector<8x32xf32> to vector<8xf32>
    %137 = vector.shape_cast %136 : vector<8xf32> to vector<8x1xf32>
    %138 = math.tanh %137 : vector<8x1xf32>
    %139 = math.exp %138 : vector<8x1xf32>
    %140 = vector.broadcast %c2_i32 : i32 to vector<8x1xi32>
    %141 = arith.cmpi slt, %140, %11 : vector<8x1xi32>
    %142 = arith.extui %141 : vector<8x1xi1> to vector<8x1xi32>
    %143 = arith.sitofp %142 : vector<8x1xi32> to vector<8x1xf32>
    %144 = arith.mulf %139, %143 : vector<8x1xf32>
    %145 = vector.broadcast %144 : vector<8x1xf32> to vector<8x32xf32>
    %146 = arith.mulf %145, %133 : vector<8x32xf32>
    %147 = arith.addf %102, %146 : vector<8x32xf32>
    %148 = arith.addf %103, %144 : vector<8x1xf32>
    %c3_i32 = arith.constant 3 : i32
    %149 = arith.index_cast %c3_i32 : i32 to index
    %c0_38 = arith.constant 0 : index
    %c0_39 = arith.constant 0 : index
    %150 = vector.load %arg8[%149, %c0_38, %c0_39] : memref<8x8x128xf32, #tpu.memory_space<vmem>>, vector<1x8x128xf32>
    %151 = vector.shape_cast %150 : vector<1x8x128xf32> to vector<8x128xf32>
    %cst_40 = arith.constant dense<0.000000e+00> : vector<8x128xf32>
    %152 = tpu.matmul %133, %9, %cst_40 {dimension_numbers = #tpu.dot_dimension_numbers<[1], [0], [0], [1], [0, 0, 1, 1], [], []>} : vector<8x32xf32>, vector<32x128xf32>, vector<8x128xf32> -> vector<8x128xf32>
    %153 = arith.addf %151, %152 : vector<8x128xf32>
    %154 = vector.extract_strided_slice %153 {offsets = [0, 0], sizes = [8, 32], strides = [1, 1]} : vector<8x128xf32> to vector<8x32xf32>
    %155 = arith.negf %154 : vector<8x32xf32>
    %156 = math.exp %155 : vector<8x32xf32>
    %cst_41 = arith.constant 1.000000e+00 : f32
    %157 = vector.broadcast %cst_41 : f32 to vector<8x32xf32>
    %158 = arith.addf %157, %156 : vector<8x32xf32>
    %159 = arith.divf %157, %158 : vector<8x32xf32>
    %160 = vector.extract_strided_slice %153 {offsets = [0, 32], sizes = [8, 32], strides = [1, 1]} : vector<8x128xf32> to vector<8x32xf32>
    %161 = arith.negf %160 : vector<8x32xf32>
    %162 = math.exp %161 : vector<8x32xf32>
    %cst_42 = arith.constant 1.000000e+00 : f32
    %163 = vector.broadcast %cst_42 : f32 to vector<8x32xf32>
    %164 = arith.addf %163, %162 : vector<8x32xf32>
    %165 = arith.divf %163, %164 : vector<8x32xf32>
    %166 = vector.extract_strided_slice %153 {offsets = [0, 64], sizes = [8, 32], strides = [1, 1]} : vector<8x128xf32> to vector<8x32xf32>
    %167 = math.tanh %166 : vector<8x32xf32>
    %168 = vector.extract_strided_slice %153 {offsets = [0, 96], sizes = [8, 32], strides = [1, 1]} : vector<8x128xf32> to vector<8x32xf32>
    %169 = arith.negf %168 : vector<8x32xf32>
    %170 = math.exp %169 : vector<8x32xf32>
    %cst_43 = arith.constant 1.000000e+00 : f32
    %171 = vector.broadcast %cst_43 : f32 to vector<8x32xf32>
    %172 = arith.addf %171, %170 : vector<8x32xf32>
    %173 = arith.divf %171, %172 : vector<8x32xf32>
    %174 = arith.mulf %165, %131 : vector<8x32xf32>
    %175 = arith.mulf %159, %167 : vector<8x32xf32>
    %176 = arith.addf %174, %175 : vector<8x32xf32>
    %177 = math.tanh %176 : vector<8x32xf32>
    %178 = arith.mulf %173, %177 : vector<8x32xf32>
    %179 = vector.broadcast %10 : vector<1x32xf32> to vector<8x32xf32>
    %180 = arith.mulf %178, %179 : vector<8x32xf32>
    %cst_44 = arith.constant dense<0.000000e+00> : vector<8xf32>
    %181 = vector.multi_reduction <add>, %180, %cst_44 [1] : vector<8x32xf32> to vector<8xf32>
    %182 = vector.shape_cast %181 : vector<8xf32> to vector<8x1xf32>
    %183 = math.tanh %182 : vector<8x1xf32>
    %184 = math.exp %183 : vector<8x1xf32>
    %185 = vector.broadcast %c3_i32 : i32 to vector<8x1xi32>
    %186 = arith.cmpi slt, %185, %11 : vector<8x1xi32>
    %187 = arith.extui %186 : vector<8x1xi1> to vector<8x1xi32>
    %188 = arith.sitofp %187 : vector<8x1xi32> to vector<8x1xf32>
    %189 = arith.mulf %184, %188 : vector<8x1xf32>
    %190 = vector.broadcast %189 : vector<8x1xf32> to vector<8x32xf32>
    %191 = arith.mulf %190, %178 : vector<8x32xf32>
    %192 = arith.addf %147, %191 : vector<8x32xf32>
    %193 = arith.addf %148, %189 : vector<8x1xf32>
    %c4_i32 = arith.constant 4 : i32
    %194 = arith.index_cast %c4_i32 : i32 to index
    %c0_45 = arith.constant 0 : index
    %c0_46 = arith.constant 0 : index
    %195 = vector.load %arg8[%194, %c0_45, %c0_46] : memref<8x8x128xf32, #tpu.memory_space<vmem>>, vector<1x8x128xf32>
    %196 = vector.shape_cast %195 : vector<1x8x128xf32> to vector<8x128xf32>
    %cst_47 = arith.constant dense<0.000000e+00> : vector<8x128xf32>
    %197 = tpu.matmul %178, %9, %cst_47 {dimension_numbers = #tpu.dot_dimension_numbers<[1], [0], [0], [1], [0, 0, 1, 1], [], []>} : vector<8x32xf32>, vector<32x128xf32>, vector<8x128xf32> -> vector<8x128xf32>
    %198 = arith.addf %196, %197 : vector<8x128xf32>
    %199 = vector.extract_strided_slice %198 {offsets = [0, 0], sizes = [8, 32], strides = [1, 1]} : vector<8x128xf32> to vector<8x32xf32>
    %200 = arith.negf %199 : vector<8x32xf32>
    %201 = math.exp %200 : vector<8x32xf32>
    %cst_48 = arith.constant 1.000000e+00 : f32
    %202 = vector.broadcast %cst_48 : f32 to vector<8x32xf32>
    %203 = arith.addf %202, %201 : vector<8x32xf32>
    %204 = arith.divf %202, %203 : vector<8x32xf32>
    %205 = vector.extract_strided_slice %198 {offsets = [0, 32], sizes = [8, 32], strides = [1, 1]} : vector<8x128xf32> to vector<8x32xf32>
    %206 = arith.negf %205 : vector<8x32xf32>
    %207 = math.exp %206 : vector<8x32xf32>
    %cst_49 = arith.constant 1.000000e+00 : f32
    %208 = vector.broadcast %cst_49 : f32 to vector<8x32xf32>
    %209 = arith.addf %208, %207 : vector<8x32xf32>
    %210 = arith.divf %208, %209 : vector<8x32xf32>
    %211 = vector.extract_strided_slice %198 {offsets = [0, 64], sizes = [8, 32], strides = [1, 1]} : vector<8x128xf32> to vector<8x32xf32>
    %212 = math.tanh %211 : vector<8x32xf32>
    %213 = vector.extract_strided_slice %198 {offsets = [0, 96], sizes = [8, 32], strides = [1, 1]} : vector<8x128xf32> to vector<8x32xf32>
    %214 = arith.negf %213 : vector<8x32xf32>
    %215 = math.exp %214 : vector<8x32xf32>
    %cst_50 = arith.constant 1.000000e+00 : f32
    %216 = vector.broadcast %cst_50 : f32 to vector<8x32xf32>
    %217 = arith.addf %216, %215 : vector<8x32xf32>
    %218 = arith.divf %216, %217 : vector<8x32xf32>
    %219 = arith.mulf %210, %176 : vector<8x32xf32>
    %220 = arith.mulf %204, %212 : vector<8x32xf32>
    %221 = arith.addf %219, %220 : vector<8x32xf32>
    %222 = math.tanh %221 : vector<8x32xf32>
    %223 = arith.mulf %218, %222 : vector<8x32xf32>
    %224 = vector.broadcast %10 : vector<1x32xf32> to vector<8x32xf32>
    %225 = arith.mulf %223, %224 : vector<8x32xf32>
    %cst_51 = arith.constant dense<0.000000e+00> : vector<8xf32>
    %226 = vector.multi_reduction <add>, %225, %cst_51 [1] : vector<8x32xf32> to vector<8xf32>
    %227 = vector.shape_cast %226 : vector<8xf32> to vector<8x1xf32>
    %228 = math.tanh %227 : vector<8x1xf32>
    %229 = math.exp %228 : vector<8x1xf32>
    %230 = vector.broadcast %c4_i32 : i32 to vector<8x1xi32>
    %231 = arith.cmpi slt, %230, %11 : vector<8x1xi32>
    %232 = arith.extui %231 : vector<8x1xi1> to vector<8x1xi32>
    %233 = arith.sitofp %232 : vector<8x1xi32> to vector<8x1xf32>
    %234 = arith.mulf %229, %233 : vector<8x1xf32>
    %235 = vector.broadcast %234 : vector<8x1xf32> to vector<8x32xf32>
    %236 = arith.mulf %235, %223 : vector<8x32xf32>
    %237 = arith.addf %192, %236 : vector<8x32xf32>
    %238 = arith.addf %193, %234 : vector<8x1xf32>
    %c5_i32 = arith.constant 5 : i32
    %239 = arith.index_cast %c5_i32 : i32 to index
    %c0_52 = arith.constant 0 : index
    %c0_53 = arith.constant 0 : index
    %240 = vector.load %arg8[%239, %c0_52, %c0_53] : memref<8x8x128xf32, #tpu.memory_space<vmem>>, vector<1x8x128xf32>
    %241 = vector.shape_cast %240 : vector<1x8x128xf32> to vector<8x128xf32>
    %cst_54 = arith.constant dense<0.000000e+00> : vector<8x128xf32>
    %242 = tpu.matmul %223, %9, %cst_54 {dimension_numbers = #tpu.dot_dimension_numbers<[1], [0], [0], [1], [0, 0, 1, 1], [], []>} : vector<8x32xf32>, vector<32x128xf32>, vector<8x128xf32> -> vector<8x128xf32>
    %243 = arith.addf %241, %242 : vector<8x128xf32>
    %244 = vector.extract_strided_slice %243 {offsets = [0, 0], sizes = [8, 32], strides = [1, 1]} : vector<8x128xf32> to vector<8x32xf32>
    %245 = arith.negf %244 : vector<8x32xf32>
    %246 = math.exp %245 : vector<8x32xf32>
    %cst_55 = arith.constant 1.000000e+00 : f32
    %247 = vector.broadcast %cst_55 : f32 to vector<8x32xf32>
    %248 = arith.addf %247, %246 : vector<8x32xf32>
    %249 = arith.divf %247, %248 : vector<8x32xf32>
    %250 = vector.extract_strided_slice %243 {offsets = [0, 32], sizes = [8, 32], strides = [1, 1]} : vector<8x128xf32> to vector<8x32xf32>
    %251 = arith.negf %250 : vector<8x32xf32>
    %252 = math.exp %251 : vector<8x32xf32>
    %cst_56 = arith.constant 1.000000e+00 : f32
    %253 = vector.broadcast %cst_56 : f32 to vector<8x32xf32>
    %254 = arith.addf %253, %252 : vector<8x32xf32>
    %255 = arith.divf %253, %254 : vector<8x32xf32>
    %256 = vector.extract_strided_slice %243 {offsets = [0, 64], sizes = [8, 32], strides = [1, 1]} : vector<8x128xf32> to vector<8x32xf32>
    %257 = math.tanh %256 : vector<8x32xf32>
    %258 = vector.extract_strided_slice %243 {offsets = [0, 96], sizes = [8, 32], strides = [1, 1]} : vector<8x128xf32> to vector<8x32xf32>
    %259 = arith.negf %258 : vector<8x32xf32>
    %260 = math.exp %259 : vector<8x32xf32>
    %cst_57 = arith.constant 1.000000e+00 : f32
    %261 = vector.broadcast %cst_57 : f32 to vector<8x32xf32>
    %262 = arith.addf %261, %260 : vector<8x32xf32>
    %263 = arith.divf %261, %262 : vector<8x32xf32>
    %264 = arith.mulf %255, %221 : vector<8x32xf32>
    %265 = arith.mulf %249, %257 : vector<8x32xf32>
    %266 = arith.addf %264, %265 : vector<8x32xf32>
    %267 = math.tanh %266 : vector<8x32xf32>
    %268 = arith.mulf %263, %267 : vector<8x32xf32>
    %269 = vector.broadcast %10 : vector<1x32xf32> to vector<8x32xf32>
    %270 = arith.mulf %268, %269 : vector<8x32xf32>
    %cst_58 = arith.constant dense<0.000000e+00> : vector<8xf32>
    %271 = vector.multi_reduction <add>, %270, %cst_58 [1] : vector<8x32xf32> to vector<8xf32>
    %272 = vector.shape_cast %271 : vector<8xf32> to vector<8x1xf32>
    %273 = math.tanh %272 : vector<8x1xf32>
    %274 = math.exp %273 : vector<8x1xf32>
    %275 = vector.broadcast %c5_i32 : i32 to vector<8x1xi32>
    %276 = arith.cmpi slt, %275, %11 : vector<8x1xi32>
    %277 = arith.extui %276 : vector<8x1xi1> to vector<8x1xi32>
    %278 = arith.sitofp %277 : vector<8x1xi32> to vector<8x1xf32>
    %279 = arith.mulf %274, %278 : vector<8x1xf32>
    %280 = vector.broadcast %279 : vector<8x1xf32> to vector<8x32xf32>
    %281 = arith.mulf %280, %268 : vector<8x32xf32>
    %282 = arith.addf %237, %281 : vector<8x32xf32>
    %283 = arith.addf %238, %279 : vector<8x1xf32>
    %c6_i32 = arith.constant 6 : i32
    %284 = arith.index_cast %c6_i32 : i32 to index
    %c0_59 = arith.constant 0 : index
    %c0_60 = arith.constant 0 : index
    %285 = vector.load %arg8[%284, %c0_59, %c0_60] : memref<8x8x128xf32, #tpu.memory_space<vmem>>, vector<1x8x128xf32>
    %286 = vector.shape_cast %285 : vector<1x8x128xf32> to vector<8x128xf32>
    %cst_61 = arith.constant dense<0.000000e+00> : vector<8x128xf32>
    %287 = tpu.matmul %268, %9, %cst_61 {dimension_numbers = #tpu.dot_dimension_numbers<[1], [0], [0], [1], [0, 0, 1, 1], [], []>} : vector<8x32xf32>, vector<32x128xf32>, vector<8x128xf32> -> vector<8x128xf32>
    %288 = arith.addf %286, %287 : vector<8x128xf32>
    %289 = vector.extract_strided_slice %288 {offsets = [0, 0], sizes = [8, 32], strides = [1, 1]} : vector<8x128xf32> to vector<8x32xf32>
    %290 = arith.negf %289 : vector<8x32xf32>
    %291 = math.exp %290 : vector<8x32xf32>
    %cst_62 = arith.constant 1.000000e+00 : f32
    %292 = vector.broadcast %cst_62 : f32 to vector<8x32xf32>
    %293 = arith.addf %292, %291 : vector<8x32xf32>
    %294 = arith.divf %292, %293 : vector<8x32xf32>
    %295 = vector.extract_strided_slice %288 {offsets = [0, 32], sizes = [8, 32], strides = [1, 1]} : vector<8x128xf32> to vector<8x32xf32>
    %296 = arith.negf %295 : vector<8x32xf32>
    %297 = math.exp %296 : vector<8x32xf32>
    %cst_63 = arith.constant 1.000000e+00 : f32
    %298 = vector.broadcast %cst_63 : f32 to vector<8x32xf32>
    %299 = arith.addf %298, %297 : vector<8x32xf32>
    %300 = arith.divf %298, %299 : vector<8x32xf32>
    %301 = vector.extract_strided_slice %288 {offsets = [0, 64], sizes = [8, 32], strides = [1, 1]} : vector<8x128xf32> to vector<8x32xf32>
    %302 = math.tanh %301 : vector<8x32xf32>
    %303 = vector.extract_strided_slice %288 {offsets = [0, 96], sizes = [8, 32], strides = [1, 1]} : vector<8x128xf32> to vector<8x32xf32>
    %304 = arith.negf %303 : vector<8x32xf32>
    %305 = math.exp %304 : vector<8x32xf32>
    %cst_64 = arith.constant 1.000000e+00 : f32
    %306 = vector.broadcast %cst_64 : f32 to vector<8x32xf32>
    %307 = arith.addf %306, %305 : vector<8x32xf32>
    %308 = arith.divf %306, %307 : vector<8x32xf32>
    %309 = arith.mulf %300, %266 : vector<8x32xf32>
    %310 = arith.mulf %294, %302 : vector<8x32xf32>
    %311 = arith.addf %309, %310 : vector<8x32xf32>
    %312 = math.tanh %311 : vector<8x32xf32>
    %313 = arith.mulf %308, %312 : vector<8x32xf32>
    %314 = vector.broadcast %10 : vector<1x32xf32> to vector<8x32xf32>
    %315 = arith.mulf %313, %314 : vector<8x32xf32>
    %cst_65 = arith.constant dense<0.000000e+00> : vector<8xf32>
    %316 = vector.multi_reduction <add>, %315, %cst_65 [1] : vector<8x32xf32> to vector<8xf32>
    %317 = vector.shape_cast %316 : vector<8xf32> to vector<8x1xf32>
    %318 = math.tanh %317 : vector<8x1xf32>
    %319 = math.exp %318 : vector<8x1xf32>
    %320 = vector.broadcast %c6_i32 : i32 to vector<8x1xi32>
    %321 = arith.cmpi slt, %320, %11 : vector<8x1xi32>
    %322 = arith.extui %321 : vector<8x1xi1> to vector<8x1xi32>
    %323 = arith.sitofp %322 : vector<8x1xi32> to vector<8x1xf32>
    %324 = arith.mulf %319, %323 : vector<8x1xf32>
    %325 = vector.broadcast %324 : vector<8x1xf32> to vector<8x32xf32>
    %326 = arith.mulf %325, %313 : vector<8x32xf32>
    %327 = arith.addf %282, %326 : vector<8x32xf32>
    %328 = arith.addf %283, %324 : vector<8x1xf32>
    %c7_i32 = arith.constant 7 : i32
    %329 = arith.index_cast %c7_i32 : i32 to index
    %c0_66 = arith.constant 0 : index
    %c0_67 = arith.constant 0 : index
    %330 = vector.load %arg8[%329, %c0_66, %c0_67] : memref<8x8x128xf32, #tpu.memory_space<vmem>>, vector<1x8x128xf32>
    %331 = vector.shape_cast %330 : vector<1x8x128xf32> to vector<8x128xf32>
    %cst_68 = arith.constant dense<0.000000e+00> : vector<8x128xf32>
    %332 = tpu.matmul %313, %9, %cst_68 {dimension_numbers = #tpu.dot_dimension_numbers<[1], [0], [0], [1], [0, 0, 1, 1], [], []>} : vector<8x32xf32>, vector<32x128xf32>, vector<8x128xf32> -> vector<8x128xf32>
    %333 = arith.addf %331, %332 : vector<8x128xf32>
    %334 = vector.extract_strided_slice %333 {offsets = [0, 0], sizes = [8, 32], strides = [1, 1]} : vector<8x128xf32> to vector<8x32xf32>
    %335 = arith.negf %334 : vector<8x32xf32>
    %336 = math.exp %335 : vector<8x32xf32>
    %cst_69 = arith.constant 1.000000e+00 : f32
    %337 = vector.broadcast %cst_69 : f32 to vector<8x32xf32>
    %338 = arith.addf %337, %336 : vector<8x32xf32>
    %339 = arith.divf %337, %338 : vector<8x32xf32>
    %340 = vector.extract_strided_slice %333 {offsets = [0, 32], sizes = [8, 32], strides = [1, 1]} : vector<8x128xf32> to vector<8x32xf32>
    %341 = arith.negf %340 : vector<8x32xf32>
    %342 = math.exp %341 : vector<8x32xf32>
    %cst_70 = arith.constant 1.000000e+00 : f32
    %343 = vector.broadcast %cst_70 : f32 to vector<8x32xf32>
    %344 = arith.addf %343, %342 : vector<8x32xf32>
    %345 = arith.divf %343, %344 : vector<8x32xf32>
    %346 = vector.extract_strided_slice %333 {offsets = [0, 64], sizes = [8, 32], strides = [1, 1]} : vector<8x128xf32> to vector<8x32xf32>
    %347 = math.tanh %346 : vector<8x32xf32>
    %348 = vector.extract_strided_slice %333 {offsets = [0, 96], sizes = [8, 32], strides = [1, 1]} : vector<8x128xf32> to vector<8x32xf32>
    %349 = arith.negf %348 : vector<8x32xf32>
    %350 = math.exp %349 : vector<8x32xf32>
    %cst_71 = arith.constant 1.000000e+00 : f32
    %351 = vector.broadcast %cst_71 : f32 to vector<8x32xf32>
    %352 = arith.addf %351, %350 : vector<8x32xf32>
    %353 = arith.divf %351, %352 : vector<8x32xf32>
    %354 = arith.mulf %345, %311 : vector<8x32xf32>
    %355 = arith.mulf %339, %347 : vector<8x32xf32>
    %356 = arith.addf %354, %355 : vector<8x32xf32>
    %357 = math.tanh %356 : vector<8x32xf32>
    %358 = arith.mulf %353, %357 : vector<8x32xf32>
    %359 = vector.broadcast %10 : vector<1x32xf32> to vector<8x32xf32>
    %360 = arith.mulf %358, %359 : vector<8x32xf32>
    %cst_72 = arith.constant dense<0.000000e+00> : vector<8xf32>
    %361 = vector.multi_reduction <add>, %360, %cst_72 [1] : vector<8x32xf32> to vector<8xf32>
    %362 = vector.shape_cast %361 : vector<8xf32> to vector<8x1xf32>
    %363 = math.tanh %362 : vector<8x1xf32>
    %364 = math.exp %363 : vector<8x1xf32>
    %365 = vector.broadcast %c7_i32 : i32 to vector<8x1xi32>
    %366 = arith.cmpi slt, %365, %11 : vector<8x1xi32>
    %367 = arith.extui %366 : vector<8x1xi1> to vector<8x1xi32>
    %368 = arith.sitofp %367 : vector<8x1xi32> to vector<8x1xf32>
    %369 = arith.mulf %364, %368 : vector<8x1xf32>
    %370 = vector.broadcast %369 : vector<8x1xf32> to vector<8x32xf32>
    %371 = arith.mulf %370, %358 : vector<8x32xf32>
    %372 = arith.addf %327, %371 : vector<8x32xf32>
    %373 = arith.addf %328, %369 : vector<8x1xf32>
    %c8_i32 = arith.constant 8 : i32
    %374 = tpu.reciprocal %373 {approx = true} : vector<8x1xf32> -> vector<8x1xf32>
    %375 = arith.mulf %373, %374 : vector<8x1xf32>
    %cst_73 = arith.constant 2.000000e+00 : f32
    %376 = vector.broadcast %cst_73 : f32 to vector<8x1xf32>
    %377 = arith.subf %376, %375 : vector<8x1xf32>
    %378 = arith.mulf %374, %377 : vector<8x1xf32>
    %379 = vector.broadcast %378 : vector<8x1xf32> to vector<8x32xf32>
    %380 = arith.mulf %372, %379 : vector<8x32xf32>
    %c0_74 = arith.constant 0 : index
    %c0_75 = arith.constant 0 : index
    %381 = vector.load %arg7[%c0_74, %c0_75] : memref<8x32xf32, #tpu.memory_space<vmem>>, vector<8x32xf32>
    tpu.vector_store %arg7[%c0_74, %c0_75], %380 {strides = array<i32>} : memref<8x32xf32, #tpu.memory_space<vmem>>, vector<8x32xf32>,
    return
  }
  func.func @transform_0(%arg0: i32) -> (i32, i32, i32) {
    %c0_i32 = arith.constant 0 : i32
    %c0_i32_0 = arith.constant 0 : i32
    %c0_i32_1 = arith.constant 0 : i32
    return %c0_i32, %arg0, %c0_i32_0 : i32, i32, i32
  }
  func.func @transform_1(%arg0: i32) -> (i32, i32) {
    %c0_i32 = arith.constant 0 : i32
    %c0_i32_0 = arith.constant 0 : i32
    return %arg0, %c0_i32 : i32, i32
  }
  func.func @transform_2(%arg0: i32) -> (i32, i32) {
    %c0_i32 = arith.constant 0 : i32
    %c0_i32_0 = arith.constant 0 : i32
    %c0_i32_1 = arith.constant 0 : i32
    return %c0_i32, %c0_i32_0 : i32, i32
  }
  func.func @transform_3(%arg0: i32) -> (i32, i32) {
    %c0_i32 = arith.constant 0 : i32
    %c0_i32_0 = arith.constant 0 : i32
    %c0_i32_1 = arith.constant 0 : i32
    return %c0_i32, %c0_i32_0 : i32, i32
  }
  func.func @transform_4(%arg0: i32) -> (i32, i32) {
    %c0_i32 = arith.constant 0 : i32
    %c0_i32_0 = arith.constant 0 : i32
    %c0_i32_1 = arith.constant 0 : i32
    return %c0_i32, %c0_i32_0 : i32, i32
  }
  func.func @transform_5(%arg0: i32) -> (i32, i32) {
    %c0_i32 = arith.constant 0 : i32
    %c0_i32_0 = arith.constant 0 : i32
    %c0_i32_1 = arith.constant 0 : i32
    return %c0_i32, %c0_i32_0 : i32, i32
  }
  func.func @transform_6(%arg0: i32) -> (i32, i32) {
    %c0_i32 = arith.constant 0 : i32
    %c0_i32_0 = arith.constant 0 : i32
    return %arg0, %c0_i32 : i32, i32
  }
}

</mosaic_0001>

<llo_original>
// kernel: tpu_custom_call.1
$region0: #{tpu_custom_call.1}
  #allocation0 [shape = 'u32[]', space=smem, size = 0x4, offset = 0x4, fixed_abs, tag = 'smem constant byte address 0x4 - core index']
  #allocation1 [shape = 'u32[72,128]{1,0:T(1,128)}', space=vmem, size = 0x9000, scoped, tag = 'internal scratch']
  #allocation2 [shape = 'f32[8,8,128]{2,1,0:T(8,128)}', space=vmem, size = 0x8000, scoped, tag = 'scratch operand']
  %s0 = inlined_call_operand.hbm [shape: f32[8,16,32], index: 0, kind: input, shape index: {}]
  %s1 = inlined_call_operand.vmem [shape: s32[16,1], index: 1, kind: input, shape index: {}]
  %s2 = inlined_call_operand.hbm [shape: f32[32,128], index: 2, kind: input, shape index: {}]
  %s3 = inlined_call_operand.hbm [shape: f32[32,128], index: 3, kind: input, shape index: {}]
  %s4 = inlined_call_operand.vmem [shape: f32[1,128], index: 4, kind: input, shape index: {}]
  %s5 = inlined_call_operand.vmem [shape: f32[1,32], index: 5, kind: input, shape index: {}]
  %s6 = inlined_call_operand.hbm [shape: f32[16,32], index: 6, kind: output, shape index: {}]
  %s7 = sld [smem:[#allocation0]]
  $region69: #{tpu_custom_call.1} parent=0
    _
  %s9 = ssub.s32 1, %s7
  %s10 = scalar_select 0, %s9, %s7
  $region1: #{tpu_custom_call.1} parent=0
    #allocation3 [shape = 'u8[65536]{0}', space=vmem, size = 0x10000, scoped, tag = 'input window, operand 0']
    #allocation4 [shape = 's32[2]{0}', space=sflag, size = 0x8, scoped, tag = 'scoped memory for tpu_custom_call.1']
    #allocation5 [shape = 's32[2]{0}', space=sflag, size = 0x8, scoped, tag = 'scoped memory for tpu_custom_call.1']
    #allocation6 [shape = 'u8[16384]{0}', space=vmem, size = 0x4000, scoped, tag = 'input window, operand 2, single buffered']
    #allocation7 [shape = 's32[1]{0}', space=sflag, size = 0x4, scoped, tag = 'scoped memory for tpu_custom_call.1']
    #allocation8 [shape = 'u8[16384]{0}', space=vmem, size = 0x4000, scoped, tag = 'input window, operand 3, single buffered']
    #allocation9 [shape = 'u8[8192]{0}', space=vmem, size = 0x2000, scoped, tag = 'output window, operand 0']
    %11 = vsyncpa [#allocation4], 0
    %s12 = scalar_lea.sflag [#allocation4], 1
    %13 = vsyncpa %s12, 0
    %14 = vsyncpa [#allocation7], 0
    %15 = vsyncpa [#allocation5], 0
    %s16 = scalar_lea.sflag [#allocation5], 1
    %17 = vsyncpa %s16, 0
    loop: start=0, step=1, limit=4
    $region2: #{tpu_custom_call.1} parent=1 // loop_pre_header
      _
    $region3: #{tpu_custom_call.1} parent=1 // loop_header
      %s19 = sphi 0, %s23
      %p20 = scmp.ge.s32.totalorder %s19, 4
      %s29 = sphi 0, %s31
      %s32 = sphi 0, %s29
      %s33 = sphi 0, %s32
      %s49 = sphi 0, %s33
      %s55 = sphi 0, %s57
      %s58 = sphi 0, %s55
      %s59 = sphi 0, %s58
      %s75 = sphi 0, %s59
      %s79 = sphi 0, %s79
      %s81 = sphi 0, %s79
      %s82 = sphi 0, %s81
      %s96 = sphi 0, %s82
      %s100 = sphi 0, %s100
      %s102 = sphi 0, %s100
      %s103 = sphi 0, %s102
      %s117 = sphi 0, %s103
      %s121 = sphi 0, %s121
      %s123 = sphi 0, %s121
      %s124 = sphi 0, %s123
      %s138 = sphi 0, %s124
      %s142 = sphi 0, %s142
      %s144 = sphi 0, %s142
      %s145 = sphi 0, %s144
      %s159 = sphi 0, %s145
      %s165 = sphi 0, %s167
      %s168 = sphi 0, %s165
      %s169 = sphi 0, %s168
      %s185 = sphi 0, %s169
    $region4: #{tpu_custom_call.1} parent=1 // loop_header_branch
      %22 = sbr.rel (%p20) target = $region8
    $region5: #{tpu_custom_call.1} parent=1 // loop_body
      %s24 = ssub.s32 %s19, 1
      %s25 = ssub.s32 %s19, 2
      %s26 = sadd.s32 %s19, 1
      %s27 = ssub.s32 %s19, %s26
      %p28 = scmp.eq.s32.totalorder %s27, 0
      %s30 = sadd.s32 %s29, 1
      %s31 = scalar_select %p28, %s29, %s30
      %p34 = pneg %p28
      %p35 = scmp.eq.s32.totalorder %s19, 1
      %p36 = por %p34, %p35
      %p37 = scmp.ne.s32.totalorder %s29, %s32
      %p38 = scmp.eq.s32.totalorder %s19, 0
      %p39 = por %p37, %p38
      %p40 = scmp.ne.s32.totalorder %s29, %s32
      %p41 = scmp.eq.s32.totalorder %s24, 1
      %p42 = por %p40, %p41
      %p43 = scmp.ne.s32.totalorder %s32, %s33
      %p44 = scmp.eq.s32.totalorder %s24, 0
      %p45 = por %p43, %p44
      %p46 = scmp.ne.s32.totalorder %s32, %s33
      %p47 = scmp.eq.s32.totalorder %s25, 1
      %p48 = por %p46, %p47
      %p50 = scmp.ne.s32.totalorder %s33, %s49
      %p51 = scmp.eq.s32.totalorder %s25, 0
      %p52 = por %p50, %p51
      %s53 = ssub.s32 %s19, %s26
      %p54 = scmp.eq.s32.totalorder %s53, 0
      %s56 = sadd.s32 %s55, 1
      %s57 = scalar_select %p54, %s55, %s56
      %p60 = pneg %p54
      %p61 = scmp.eq.s32.totalorder %s19, 1
      %p62 = por %p60, %p61
      %p63 = scmp.ne.s32.totalorder %s55, %s58
      %p64 = scmp.eq.s32.totalorder %s19, 0
      %p65 = por %p63, %p64
      %p66 = scmp.ne.s32.totalorder %s55, %s58
      %p67 = scmp.eq.s32.totalorder %s24, 1
      %p68 = por %p66, %p67
      %p69 = scmp.ne.s32.totalorder %s58, %s59
      %p70 = scmp.eq.s32.totalorder %s24, 0
      %p71 = por %p69, %p70
      %p72 = scmp.ne.s32.totalorder %s58, %s59
      %p73 = scmp.eq.s32.totalorder %s25, 1
      %p74 = por %p72, %p73
      %p76 = scmp.ne.s32.totalorder %s59, %s75
      %p77 = scmp.eq.s32.totalorder %s25, 0
      %p78 = por %p76, %p77
      %s80 = sadd.s32 %s79, 1
      %p83 = scmp.eq.s32.totalorder %s19, 1
      %p84 = scmp.ne.s32.totalorder %s79, %s81
      %p85 = scmp.eq.s32.totalorder %s19, 0
      %p86 = por %p84, %p85
      %p87 = scmp.ne.s32.totalorder %s79, %s81
      %p88 = scmp.eq.s32.totalorder %s24, 1
      %p89 = por %p87, %p88
      %p90 = scmp.ne.s32.totalorder %s81, %s82
      %p91 = scmp.eq.s32.totalorder %s24, 0
      %p92 = por %p90, %p91
      %p93 = scmp.ne.s32.totalorder %s81, %s82
      %p94 = scmp.eq.s32.totalorder %s25, 1
      %p95 = por %p93, %p94
      %p97 = scmp.ne.s32.totalorder %s82, %s96
      %p98 = scmp.eq.s32.totalorder %s25, 0
      %p99 = por %p97, %p98
      %s101 = sadd.s32 %s100, 1
      %p104 = scmp.eq.s32.totalorder %s19, 1
      %p105 = scmp.ne.s32.totalorder %s100, %s102
      %p106 = scmp.eq.s32.totalorder %s19, 0
      %p107 = por %p105, %p106
      %p108 = scmp.ne.s32.totalorder %s100, %s102
      %p109 = scmp.eq.s32.totalorder %s24, 1
      %p110 = por %p108, %p109
      %p111 = scmp.ne.s32.totalorder %s102, %s103
      %p112 = scmp.eq.s32.totalorder %s24, 0
      %p113 = por %p111, %p112
      %p114 = scmp.ne.s32.totalorder %s102, %s103
      %p115 = scmp.eq.s32.totalorder %s25, 1
      %p116 = por %p114, %p115
      %p118 = scmp.ne.s32.totalorder %s103, %s117
      %p119 = scmp.eq.s32.totalorder %s25, 0
      %p120 = por %p118, %p119
      %s122 = sadd.s32 %s121, 1
      %p125 = scmp.eq.s32.totalorder %s19, 1
      %p126 = scmp.ne.s32.totalorder %s121, %s123
      %p127 = scmp.eq.s32.totalorder %s19, 0
      %p128 = por %p126, %p127
      %p129 = scmp.ne.s32.totalorder %s121, %s123
      %p130 = scmp.eq.s32.totalorder %s24, 1
      %p131 = por %p129, %p130
      %p132 = scmp.ne.s32.totalorder %s123, %s124
      %p133 = scmp.eq.s32.totalorder %s24, 0
      %p134 = por %p132, %p133
      %p135 = scmp.ne.s32.totalorder %s123, %s124
      %p136 = scmp.eq.s32.totalorder %s25, 1
      %p137 = por %p135, %p136
      %p139 = scmp.ne.s32.totalorder %s124, %s138
      %p140 = scmp.eq.s32.totalorder %s25, 0
      %p141 = por %p139, %p140
      %s143 = sadd.s32 %s142, 1
      %p146 = scmp.eq.s32.totalorder %s19, 1
      %p147 = scmp.ne.s32.totalorder %s142, %s144
      %p148 = scmp.eq.s32.totalorder %s19, 0
      %p149 = por %p147, %p148
      %p150 = scmp.ne.s32.totalorder %s142, %s144
      %p151 = scmp.eq.s32.totalorder %s24, 1
      %p152 = por %p150, %p151
      %p153 = scmp.ne.s32.totalorder %s144, %s145
      %p154 = scmp.eq.s32.totalorder %s24, 0
      %p155 = por %p153, %p154
      %p156 = scmp.ne.s32.totalorder %s144, %s145
      %p157 = scmp.eq.s32.totalorder %s25, 1
      %p158 = por %p156, %p157
      %p160 = scmp.ne.s32.totalorder %s145, %s159
      %p161 = scmp.eq.s32.totalorder %s25, 0
      %p162 = por %p160, %p161
      %s163 = ssub.s32 %s19, %s26
      %p164 = scmp.eq.s32.totalorder %s163, 0
      %s166 = sadd.s32 %s165, 1
      %s167 = scalar_select %p164, %s165, %s166
      %p170 = pneg %p164
      %p171 = scmp.eq.s32.totalorder %s19, 1
      %p172 = por %p170, %p171
      %p173 = scmp.ne.s32.totalorder %s165, %s168
      %p174 = scmp.eq.s32.totalorder %s19, 0
      %p175 = por %p173, %p174
      %p176 = scmp.ne.s32.totalorder %s165, %s168
      %p177 = scmp.eq.s32.totalorder %s24, 1
      %p178 = por %p176, %p177
      %p179 = scmp.ne.s32.totalorder %s168, %s169
      %p180 = scmp.eq.s32.totalorder %s24, 0
      %p181 = por %p179, %p180
      %p182 = scmp.ne.s32.totalorder %s168, %s169
      %p183 = scmp.eq.s32.totalorder %s25, 1
      %p184 = por %p182, %p183
      %p186 = scmp.ne.s32.totalorder %s169, %s185
      %p187 = scmp.eq.s32.totalorder %s25, 0
      %p188 = por %p186, %p187
      %p189 = scmp.le.s32.totalorder 1, %s19
      %p190 = scmp.lt.s32.totalorder %s19, 3
      %p191 = pnand %p189, %p190
      %p192 = pneg %p191
      // Predicated region
      $region9: #{tpu_custom_call.1} parent=5 // pred_check
        _
      $region10: #{tpu_custom_call.1} parent=5 // pred_check_branch
        %194 = sbr.rel (%p191) target = $region12
      $region11: #{tpu_custom_call.1} parent=5 // pred_region
        %s195 = ssub.s32 %s19, 1
        // Predicated region
        $region13: #{tpu_custom_call.1} parent=11 // pred_check
          %p196 = pneg %p92
        $region14: #{tpu_custom_call.1} parent=11 // pred_check_branch
          %198 = sbr.rel (%p196) target = $region16
        $region15: #{tpu_custom_call.1} parent=11 // pred_region
          %200 = vsyncadd [#allocation7], 0
          %s201 = sshll.u32 %s2, 4
          %s202 = int_to_ptr.hbm [resolvable:$true] %s201
          %s203 = sshll.u32 [#allocation6], 4
          %s204 = int_to_ptr.vmem [resolvable:$true] %s203
          %209 = dma.hbm_to_vmem [thread:$0]  %s202, 512, %s204, [#allocation7], 128, 128, 8
        $region16: #{tpu_custom_call.1} parent=11 // pred_fallthru
          _
        // Predicated region
        $region17: #{tpu_custom_call.1} parent=11 // pred_check
          %p210 = pneg %p113
        $region18: #{tpu_custom_call.1} parent=11 // pred_check_branch
          %212 = sbr.rel (%p210) target = $region20
        $region19: #{tpu_custom_call.1} parent=11 // pred_region
          %214 = vsyncadd [#allocation7], 0
          %s215 = sshll.u32 %s3, 4
          %s216 = int_to_ptr.hbm [resolvable:$true] %s215
          %s217 = sshll.u32 [#allocation8], 4
          %s218 = int_to_ptr.vmem [resolvable:$true] %s217
          %223 = dma.hbm_to_vmem [thread:$0]  %s216, 512, %s218, [#allocation7], 128, 128, 8
        $region20: #{tpu_custom_call.1} parent=11 // pred_fallthru
          _
        // Predicated region
        $region21: #{tpu_custom_call.1} parent=11 // pred_check
          %p224 = pneg %p134
        $region22: #{tpu_custom_call.1} parent=11 // pred_check_branch
          %226 = sbr.rel (%p224) target = $region24
        $region23: #{tpu_custom_call.1} parent=11 // pred_region
          _
        $region24: #{tpu_custom_call.1} parent=11 // pred_fallthru
          _
        // Predicated region
        $region25: #{tpu_custom_call.1} parent=11 // pred_check
          %p227 = pneg %p155
        $region26: #{tpu_custom_call.1} parent=11 // pred_check_branch
          %229 = sbr.rel (%p227) target = $region28
        $region27: #{tpu_custom_call.1} parent=11 // pred_region
          _
        $region28: #{tpu_custom_call.1} parent=11 // pred_fallthru
          _
      $region12: #{tpu_custom_call.1} parent=5 // pred_fallthru
        _
      %p230 = scmp.lt.s32.totalorder %s19, 2
      // Predicated region
      $region29: #{tpu_custom_call.1} parent=5 // pred_check
        %p231 = pneg %p230
      $region30: #{tpu_custom_call.1} parent=5 // pred_check_branch
        %233 = sbr.rel (%p231) target = $region32
      $region31: #{tpu_custom_call.1} parent=5 // pred_region
        // Predicated region
        $region33: #{tpu_custom_call.1} parent=31 // pred_check
          %p234 = pneg %p39
        $region34: #{tpu_custom_call.1} parent=31 // pred_check_branch
          %236 = sbr.rel (%p234) target = $region36
        $region35: #{tpu_custom_call.1} parent=31 // pred_region
          %s237 = sand.u32 %s29, 1
          %s238 = scalar_lea.sflag [#allocation4], %s237
          %s239 = sand.u32 %s29, 1
          %s240 = smul.addr %s239, 64
          %s241 = scalar_lea.vmem [#allocation3], %s240
          %243 = vsyncadd %s238, 0
          %s244 = smul.addr %s19, 8
          %s245 = scalar_lea.hbm %s0, %s244
          %s246 = sshll.u32 %s245, 4
          %s247 = int_to_ptr.hbm [resolvable:$true] %s246
          %s248 = sshll.u32 %s241, 4
          %s249 = int_to_ptr.vmem [resolvable:$true] %s248
          %254 = dma.hbm_to_vmem [thread:$0]  %s247, 1024, %s249, %s238, 256, 128, 8
        $region36: #{tpu_custom_call.1} parent=31 // pred_fallthru
          _
        // Predicated region
        $region37: #{tpu_custom_call.1} parent=31 // pred_check
          %p255 = pneg %p65
        $region38: #{tpu_custom_call.1} parent=31 // pred_check_branch
          %257 = sbr.rel (%p255) target = $region40
        $region39: #{tpu_custom_call.1} parent=31 // pred_region
          %p258 = scmp.lt.s32.totalorder %s19, 1
          %s259 = scalar_select %p258, %s19, 1
          %s260 = smul.addr %s259, 8
          %s261 = scalar_lea.vmem %s1, %s260
        $region40: #{tpu_custom_call.1} parent=31 // pred_fallthru
          _
      $region32: #{tpu_custom_call.1} parent=5 // pred_fallthru
        _
      %p262 = scmp.le.s32.totalorder 1, %s19
      %p263 = scmp.lt.s32.totalorder %s19, 3
      %p264 = pnand %p262, %p263
      %p265 = pneg %p264
      // Predicated region
      $region41: #{tpu_custom_call.1} parent=5 // pred_check
        _
      $region42: #{tpu_custom_call.1} parent=5 // pred_check_branch
        %267 = sbr.rel (%p264) target = $region44
      $region43: #{tpu_custom_call.1} parent=5 // pred_region
        %s268 = ssub.s32 %s19, 1
        %s269 = sand.u32 %s32, 1
        %s270 = scalar_lea.sflag [#allocation4], %s269
        %s271 = sand.u32 %s32, 1
        %s272 = smul.addr %s271, 64
        %s273 = scalar_lea.vmem [#allocation3], %s272
        // Predicated region
        $region45: #{tpu_custom_call.1} parent=43 // pred_check
          %p274 = pneg %p45
        $region46: #{tpu_custom_call.1} parent=43 // pred_check_branch
          %276 = sbr.rel (%p274) target = $region48
        $region47: #{tpu_custom_call.1} parent=43 // pred_region
          %278 = dma.done %s270, 1024
        $region48: #{tpu_custom_call.1} parent=43 // pred_fallthru
          _
        // Predicated region
        $region49: #{tpu_custom_call.1} parent=43 // pred_check
          %p279 = pneg %p92
        $region50: #{tpu_custom_call.1} parent=43 // pred_check_branch
          %281 = sbr.rel (%p279) target = $region52
        $region51: #{tpu_custom_call.1} parent=43 // pred_region
          %283 = dma.done [#allocation7], 512
        $region52: #{tpu_custom_call.1} parent=43 // pred_fallthru
          _
        // Predicated region
        $region53: #{tpu_custom_call.1} parent=43 // pred_check
          %p284 = pneg %p113
        $region54: #{tpu_custom_call.1} parent=43 // pred_check_branch
          %286 = sbr.rel (%p284) target = $region56
        $region55: #{tpu_custom_call.1} parent=43 // pred_region
          %288 = dma.done [#allocation7], 512
        $region56: #{tpu_custom_call.1} parent=43 // pred_fallthru
          _
        %s289 = sand.u32 %s32, 1
        %s290 = scalar_lea.sflag [#allocation4], %s289
        %s291 = sand.u32 %s32, 1
        %s292 = smul.addr %s291, 64
        %s293 = scalar_lea.vmem [#allocation3], %s292
        %p294 = pneg %p45
        %p295 = pneg %p42
        %p296 = scmp.lt.s32.totalorder %s24, 1
        %s297 = scalar_select %p296, %s24, 1
        %s298 = smul.addr %s297, 8
        %s299 = scalar_lea.vmem %s1, %s298
        %p300 = pneg %p71
        %p301 = pneg %p68
        %p302 = pneg %p92
        %p303 = pneg %p89
        %p304 = pneg %p113
        %p305 = pneg %p110
        %p306 = pneg %p134
        %p307 = pneg %p131
        %p308 = pneg %p155
        %p309 = pneg %p152
        %p310 = pneg %p181
        %p311 = pneg %p178
        %s312 = sand.u32 %s168, 1
        %s313 = scalar_lea.sflag [#allocation5], %s312
        %s314 = sand.u32 %s168, 1
        %s315 = smul.addr %s314, 8
        %s316 = scalar_lea.vmem [#allocation9], %s315
        %p317 = scmp.lt.s32.totalorder %s24, 1
        %s318 = scalar_select %p317, %s24, 1
        %s319 = smul.addr %s318, 8
        %s320 = scalar_lea.vmem %s1, %s319
        %v321 = vld [vmem:[%s273] sm:$0xff]
        %v322 = vld [vmem:[%s273 + $0x8] sm:$0xff]
        %v323 = vld [vmem:[%s273 + $0x10] sm:$0xff]
        %v324 = vld [vmem:[%s273 + $0x18] sm:$0xff]
        %v325 = vld [vmem:[%s273 + $0x20] sm:$0xff]
        %v326 = vld [vmem:[%s273 + $0x28] sm:$0xff]
        %v327 = vld [vmem:[%s273 + $0x30] sm:$0xff]
        %v328 = vld [vmem:[%s273 + $0x38] sm:$0xff]
        %v329 = vld [vmem:[#allocation6] sm:$0xff]
        %v330 = vld [vmem:[#allocation6 + $0x8] sm:$0xff]
        %v331 = vld [vmem:[#allocation6 + $0x10] sm:$0xff]
        %v332 = vld [vmem:[#allocation6 + $0x18] sm:$0xff]
        %v333 = vld [vmem:[%s4] sm:$0x1]
        %v335 = vperm.slane %v333, 0
        %vm337 = vcmask 261120
        %v339 = vsel %vm337, %v321, 0
        %v342 = vsel %vm337, %v322, 0
        %v345 = vsel %vm337, %v323, 0
        %v348 = vsel %vm337, %v324, 0
        %v351 = vsel %vm337, %v325, 0
        %v354 = vsel %vm337, %v326, 0
        %v357 = vsel %vm337, %v327, 0
        %v360 = vsel %vm337, %v328, 0
        %362 = vmatpush.msra.mxu0 0.0
        %363 = vmatpush.msra.mxu0 0.0
        %364 = vmatpush.msra.mxu0 0.0
        %365 = vmatpush.msra.mxu0 0.0
        %366 = vmatpush.msra.mxu0 0.0
        %367 = vmatpush.msra.mxu0 0.0
        %368 = vmatpush.msra.mxu0 0.0
        %369 = vmatpush.msra.mxu0 0.0
        %370 = vmatpush.msra.mxu0 0.0
        %371 = vmatpush.msra.mxu0 0.0
        %372 = vmatpush.msra.mxu0 0.0
        %373 = vmatpush.msra.mxu0 0.0
        %374 = vmatpush.msra.mxu0 %v332
        %375 = vmatpush.msra.mxu0 %v331
        %376 = vmatpush.msra.mxu0 %v330
        %377 = vmatpush.msra.mxu0 %v329
        %378 = vmatmul.f32.gmra.mxu0 %v339
        %v379 = vpop.f32.mrf.mxu0
        %v380 = vadd.f32 %v335, %v379
        %381 = vmatmul.f32.gmra.mxu0 %v342
        %v382 = vpop.f32.mrf.mxu0
        %v383 = vadd.f32 %v335, %v382
        %384 = vmatmul.f32.gmra.mxu0 %v345
        %v385 = vpop.f32.mrf.mxu0
        %v386 = vadd.f32 %v335, %v385
        %387 = vmatmul.f32.gmra.mxu0 %v348
        %v388 = vpop.f32.mrf.mxu0
        %v389 = vadd.f32 %v335, %v388
        %390 = vmatmul.f32.gmra.mxu0 %v351
        %v391 = vpop.f32.mrf.mxu0
        %v392 = vadd.f32 %v335, %v391
        %393 = vmatmul.f32.gmra.mxu0 %v354
        %v394 = vpop.f32.mrf.mxu0
        %v395 = vadd.f32 %v335, %v394
        %396 = vmatmul.f32.gmra.mxu0 %v357
        %v397 = vpop.f32.mrf.mxu0
        %v398 = vadd.f32 %v335, %v397
        %399 = vmatmul.f32.gmra.mxu0 %v360
        %v400 = vpop.f32.mrf.mxu0
        %v401 = vadd.f32 %v335, %v400
        %402 = vdwg.mxu0
        %403 = vst [vmem:[#allocation2] sm:$0xff] %v380
        %404 = vst [vmem:[#allocation2 + $0x8] sm:$0xff] %v383
        %405 = vst [vmem:[#allocation2 + $0x10] sm:$0xff] %v386
        %406 = vst [vmem:[#allocation2 + $0x18] sm:$0xff] %v389
        %407 = vst [vmem:[#allocation2 + $0x20] sm:$0xff] %v392
        %408 = vst [vmem:[#allocation2 + $0x28] sm:$0xff] %v395
        %409 = vst [vmem:[#allocation2 + $0x30] sm:$0xff] %v398
        %410 = vst [vmem:[#allocation2 + $0x38] sm:$0xff] %v401
        %v411 = vld [vmem:[#allocation8] sm:$0xff]
        %v412 = vld [vmem:[#allocation8 + $0x8] sm:$0xff]
        %v413 = vld [vmem:[#allocation8 + $0x10] sm:$0xff]
        %v414 = vld [vmem:[#allocation8 + $0x18] sm:$0xff]
        %v415 = vld [vmem:[%s5] sm:$0x1]
        %v416 = vld [vmem:[%s320] sm:$0xff]
        %v417 = vld [vmem:[#allocation2] sm:$0xff]
        %v419 = vsel %vm337, 0.0, 0
        %421 = vmatpush.msra.mxu0 0.0
        %422 = vmatpush.msra.mxu0 0.0
        %423 = vmatpush.msra.mxu0 0.0
        %424 = vmatpush.msra.mxu0 0.0
        %425 = vmatpush.msra.mxu0 0.0
        %426 = vmatpush.msra.mxu0 0.0
        %427 = vmatpush.msra.mxu0 0.0
        %428 = vmatpush.msra.mxu0 0.0
        %429 = vmatpush.msra.mxu0 0.0
        %430 = vmatpush.msra.mxu0 0.0
        %431 = vmatpush.msra.mxu0 0.0
        %432 = vmatpush.msra.mxu0 0.0
        %433 = vmatpush.msra.mxu0 %v414
        %434 = vmatpush.msra.mxu0 %v413
        %435 = vmatpush.msra.mxu0 %v412
        %436 = vmatpush.msra.mxu0 %v411
        %437 = vmatmul.f32.gmra.mxu0 %v419
        %v438 = vpop.f32.mrf.mxu0
        %v439 = vadd.f32 0.0, %v438
        %440 = vdwg.mxu0
        %v441 = vadd.f32 %v417, %v439
        %v442 = vxor.u32 %v441, 2147483648
        %v443 = vmul.f32 %v442, 1.442695
        %v444 = vpow.pop %v443
        %v445 = vadd.f32 %v444, 1.0
        %v446 = vrcp.pop %v445
        %v447 = vmul.f32 %v445, %v446
        %v448 = vsub.f32 1.0, %v447
        %v449 = vmul.f32 %v446, %v448
        %v450 = vadd.f32 %v446, %v449
        %vm451 = vweird.f32 %v445
        %vm452 = vweird.f32 %v446
        %vm453 = vmor %vm451, %vm452
        %v454 = vsel %vm453, %v446, %v450
        %v455 = vand.u32 2147483647, %v445
        %vm456 = vcmp.eq.f32.partialorder %v455, 8.507059e+37
        %v457 = vand.u32 %v445, 2147483648
        %v458 = vor.u32 1.1754944e-38, %v457
        %v459 = vsel %vm456, %v458, %v454
        %v460 = vmul.f32 1.0, %v459
        %v461 = vtanh.pop %v441
        %v462 = vmul.f32 %v460, 0.0
        %464 = vrot.lane.b32.xlu0 %v461, 64
        %v465 = vpop.permute.xlu0 %464
        %v467 = vmul.f32 %v460, %v465
        %469 = vrot.lane.b32.xlu0 %v467, 32
        %v470 = vpop.permute.xlu0 %469
        %v472 = vadd.f32 %v462, %v470
        %v473 = vtanh.pop %v472
        %475 = vrot.lane.b32.xlu0 %v473, 64
        %v476 = vpop.permute.xlu0 %475
        %v478 = vmul.f32 %v460, %v476
        %v480 = vperm.slane %v415, 0
        %481 = vrot.lane.b32.xlu0 %v480, 96
        %v482 = vpop.permute.xlu0 %481
        %v484 = vmul.f32 %v478, %v482
        %486 = vrot.lane.b32.xlu0 %v484, 32
        %v487 = vpop.permute.xlu0 %486
        %v489 = vsel %vm337, %v487, 0.0
        %490 = vadd.xlane.f32.xlu0 %v489
        %v491 = vpop.xlane.xlu0 %490
        %v492 = vtanh.pop %v491
        %v493 = vmul.f32 %v492, 1.442695
        %v494 = vpow.pop %v493
        %vm495 = vcmp.gt.s32.totalorder %v416, 0
        %v496 = vsel %vm495, 1, 0
        %v497 = vcvt.s32.f32 %v496
        %v498 = vmul.f32 %v494, %v497
        %500 = vset.pattern.permute.xlu0 0
        %501 = vperm.xlu0 %500, %v498
        %v502 = vpop.permute.xlu0 %501
        %v504 = vmul.f32 %v502, %v478
        %v505 = vadd.f32 %v504, 0.0
        %v506 = vadd.f32 %v498, 0.0
        %s507 = scalar_lea.vmem [#allocation2], 8
        %v508 = vld [vmem:[%s507] sm:$0xff]
        %510 = vrot.lane.b32.xlu0 %v478, 32
        %v511 = vpop.permute.xlu0 %510
        %v512 = vsel %vm337, %v511, 0
        %514 = vmatpush.msra.mxu0 0.0
        %515 = vmatpush.msra.mxu0 0.0
        %516 = vmatpush.msra.mxu0 0.0
        %517 = vmatpush.msra.mxu0 0.0
        %518 = vmatpush.msra.mxu0 0.0
        %519 = vmatpush.msra.mxu0 0.0
        %520 = vmatpush.msra.mxu0 0.0
        %521 = vmatpush.msra.mxu0 0.0
        %522 = vmatpush.msra.mxu0 0.0
        %523 = vmatpush.msra.mxu0 0.0
        %524 = vmatpush.msra.mxu0 0.0
        %525 = vmatpush.msra.mxu0 0.0
        %526 = vmatpush.msra.mxu0 %v414
        %527 = vmatpush.msra.mxu0 %v413
        %528 = vmatpush.msra.mxu0 %v412
        %529 = vmatpush.msra.mxu0 %v411
        %530 = vmatmul.f32.gmra.mxu0 %v512
        %v531 = vpop.f32.mrf.mxu0
        %v532 = vadd.f32 0.0, %v531
        %533 = vdwg.mxu0
        %v534 = vadd.f32 %v508, %v532
        %v535 = vxor.u32 %v534, 2147483648
        %v536 = vmul.f32 %v535, 1.442695
        %v537 = vpow.pop %v536
        %v538 = vadd.f32 %v537, 1.0
        %v539 = vrcp.pop %v538
        %v540 = vmul.f32 %v538, %v539
        %v541 = vsub.f32 1.0, %v540
        %v542 = vmul.f32 %v539, %v541
        %v543 = vadd.f32 %v539, %v542
        %vm544 = vweird.f32 %v538
        %vm545 = vweird.f32 %v539
        %vm546 = vmor %vm544, %vm545
        %v547 = vsel %vm546, %v539, %v543
        %v548 = vand.u32 2147483647, %v538
        %vm549 = vcmp.eq.f32.partialorder %v548, 8.507059e+37
        %v550 = vand.u32 %v538, 2147483648
        %v551 = vor.u32 1.1754944e-38, %v550
        %v552 = vsel %vm549, %v551, %v547
        %v553 = vmul.f32 1.0, %v552
        %v554 = vtanh.pop %v534
        %v555 = vmul.f32 %v553, %v472
        %557 = vrot.lane.b32.xlu0 %v554, 64
        %v558 = vpop.permute.xlu0 %557
        %v560 = vmul.f32 %v553, %v558
        %562 = vrot.lane.b32.xlu0 %v560, 32
        %v563 = vpop.permute.xlu0 %562
        %v565 = vadd.f32 %v555, %v563
        %v566 = vtanh.pop %v565
        %568 = vrot.lane.b32.xlu0 %v566, 64
        %v569 = vpop.permute.xlu0 %568
        %v571 = vmul.f32 %v553, %v569
        %v572 = vmul.f32 %v571, %v482
        %574 = vrot.lane.b32.xlu0 %v572, 32
        %v575 = vpop.permute.xlu0 %574
        %v577 = vsel %vm337, %v575, 0.0
        %578 = vadd.xlane.f32.xlu0 %v577
        %v579 = vpop.xlane.xlu0 %578
        %v580 = vtanh.pop %v579
        %v581 = vmul.f32 %v580, 1.442695
        %v582 = vpow.pop %v581
        %vm583 = vcmp.gt.s32.totalorder %v416, 1
        %v584 = vsel %vm583, 1, 0
        %v585 = vcvt.s32.f32 %v584
        %v586 = vmul.f32 %v582, %v585
        %588 = vset.pattern.permute.xlu0 0
        %589 = vperm.xlu0 %588, %v586
        %v590 = vpop.permute.xlu0 %589
        %v592 = vmul.f32 %v590, %v571
        %v593 = vadd.f32 %v505, %v592
        %v594 = vadd.f32 %v506, %v586
        %s595 = scalar_lea.vmem [#allocation2], 16
        %v596 = vld [vmem:[%s595] sm:$0xff]
        %598 = vrot.lane.b32.xlu0 %v571, 32
        %v599 = vpop.permute.xlu0 %598
        %v600 = vsel %vm337, %v599, 0
        %602 = vmatpush.msra.mxu0 0.0
        %603 = vmatpush.msra.mxu0 0.0
        %604 = vmatpush.msra.mxu0 0.0
        %605 = vmatpush.msra.mxu0 0.0
        %606 = vmatpush.msra.mxu0 0.0
        %607 = vmatpush.msra.mxu0 0.0
        %608 = vmatpush.msra.mxu0 0.0
        %609 = vmatpush.msra.mxu0 0.0
        %610 = vmatpush.msra.mxu0 0.0
        %611 = vmatpush.msra.mxu0 0.0
        %612 = vmatpush.msra.mxu0 0.0
        %613 = vmatpush.msra.mxu0 0.0
        %614 = vmatpush.msra.mxu0 %v414
        %615 = vmatpush.msra.mxu0 %v413
        %616 = vmatpush.msra.mxu0 %v412
        %617 = vmatpush.msra.mxu0 %v411
        %618 = vmatmul.f32.gmra.mxu0 %v600
        %v619 = vpop.f32.mrf.mxu0
        %v620 = vadd.f32 0.0, %v619
        %621 = vdwg.mxu0
        %v622 = vadd.f32 %v596, %v620
        %v623 = vxor.u32 %v622, 2147483648
        %v624 = vmul.f32 %v623, 1.442695
        %v625 = vpow.pop %v624
        %v626 = vadd.f32 %v625, 1.0
        %v627 = vrcp.pop %v626
        %v628 = vmul.f32 %v626, %v627
        %v629 = vsub.f32 1.0, %v628
        %v630 = vmul.f32 %v627, %v629
        %v631 = vadd.f32 %v627, %v630
        %vm632 = vweird.f32 %v626
        %vm633 = vweird.f32 %v627
        %vm634 = vmor %vm632, %vm633
        %v635 = vsel %vm634, %v627, %v631
        %v636 = vand.u32 2147483647, %v626
        %vm637 = vcmp.eq.f32.partialorder %v636, 8.507059e+37
        %v638 = vand.u32 %v626, 2147483648
        %v639 = vor.u32 1.1754944e-38, %v638
        %v640 = vsel %vm637, %v639, %v635
        %v641 = vmul.f32 1.0, %v640
        %v642 = vtanh.pop %v622
        %v643 = vmul.f32 %v641, %v565
        %645 = vrot.lane.b32.xlu0 %v642, 64
        %v646 = vpop.permute.xlu0 %645
        %v648 = vmul.f32 %v641, %v646
        %650 = vrot.lane.b32.xlu0 %v648, 32
        %v651 = vpop.permute.xlu0 %650
        %v653 = vadd.f32 %v643, %v651
        %v654 = vtanh.pop %v653
        %656 = vrot.lane.b32.xlu0 %v654, 64
        %v657 = vpop.permute.xlu0 %656
        %v659 = vmul.f32 %v641, %v657
        %v660 = vmul.f32 %v659, %v482
        %662 = vrot.lane.b32.xlu0 %v660, 32
        %v663 = vpop.permute.xlu0 %662
        %v665 = vsel %vm337, %v663, 0.0
        %666 = vadd.xlane.f32.xlu0 %v665
        %v667 = vpop.xlane.xlu0 %666
        %v668 = vtanh.pop %v667
        %v669 = vmul.f32 %v668, 1.442695
        %v670 = vpow.pop %v669
        %vm671 = vcmp.gt.s32.totalorder %v416, 2
        %v672 = vsel %vm671, 1, 0
        %v673 = vcvt.s32.f32 %v672
        %v674 = vmul.f32 %v670, %v673
        %676 = vset.pattern.permute.xlu0 0
        %677 = vperm.xlu0 %676, %v674
        %v678 = vpop.permute.xlu0 %677
        %v680 = vmul.f32 %v678, %v659
        %v681 = vadd.f32 %v593, %v680
        %v682 = vadd.f32 %v594, %v674
        %s683 = scalar_lea.vmem [#allocation2], 24
        %v684 = vld [vmem:[%s683] sm:$0xff]
        %686 = vrot.lane.b32.xlu0 %v659, 32
        %v687 = vpop.permute.xlu0 %686
        %v688 = vsel %vm337, %v687, 0
        %690 = vmatpush.msra.mxu0 0.0
        %691 = vmatpush.msra.mxu0 0.0
        %692 = vmatpush.msra.mxu0 0.0
        %693 = vmatpush.msra.mxu0 0.0
        %694 = vmatpush.msra.mxu0 0.0
        %695 = vmatpush.msra.mxu0 0.0
        %696 = vmatpush.msra.mxu0 0.0
        %697 = vmatpush.msra.mxu0 0.0
        %698 = vmatpush.msra.mxu0 0.0
        %699 = vmatpush.msra.mxu0 0.0
        %700 = vmatpush.msra.mxu0 0.0
        %701 = vmatpush.msra.mxu0 0.0
        %702 = vmatpush.msra.mxu0 %v414
        %703 = vmatpush.msra.mxu0 %v413
        %704 = vmatpush.msra.mxu0 %v412
        %705 = vmatpush.msra.mxu0 %v411
        %706 = vmatmul.f32.gmra.mxu0 %v688
        %v707 = vpop.f32.mrf.mxu0
        %v708 = vadd.f32 0.0, %v707
        %709 = vdwg.mxu0
        %v710 = vadd.f32 %v684, %v708
        %v711 = vxor.u32 %v710, 2147483648
        %v712 = vmul.f32 %v711, 1.442695
        %v713 = vpow.pop %v712
        %v714 = vadd.f32 %v713, 1.0
        %v715 = vrcp.pop %v714
        %v716 = vmul.f32 %v714, %v715
        %v717 = vsub.f32 1.0, %v716
        %v718 = vmul.f32 %v715, %v717
        %v719 = vadd.f32 %v715, %v718
        %vm720 = vweird.f32 %v714
        %vm721 = vweird.f32 %v715
        %vm722 = vmor %vm720, %vm721
        %v723 = vsel %vm722, %v715, %v719
        %v724 = vand.u32 2147483647, %v714
        %vm725 = vcmp.eq.f32.partialorder %v724, 8.507059e+37
        %v726 = vand.u32 %v714, 2147483648
        %v727 = vor.u32 1.1754944e-38, %v726
        %v728 = vsel %vm725, %v727, %v723
        %v729 = vmul.f32 1.0, %v728
        %v730 = vtanh.pop %v710
        %v731 = vmul.f32 %v729, %v653
        %733 = vrot.lane.b32.xlu0 %v730, 64
        %v734 = vpop.permute.xlu0 %733
        %v736 = vmul.f32 %v729, %v734
        %738 = vrot.lane.b32.xlu0 %v736, 32
        %v739 = vpop.permute.xlu0 %738
        %v741 = vadd.f32 %v731, %v739
        %v742 = vtanh.pop %v741
        %744 = vrot.lane.b32.xlu0 %v742, 64
        %v745 = vpop.permute.xlu0 %744
        %v747 = vmul.f32 %v729, %v745
        %v748 = vmul.f32 %v747, %v482
        %750 = vrot.lane.b32.xlu0 %v748, 32
        %v751 = vpop.permute.xlu0 %750
        %v753 = vsel %vm337, %v751, 0.0
        %754 = vadd.xlane.f32.xlu0 %v753
        %v755 = vpop.xlane.xlu0 %754
        %v756 = vtanh.pop %v755
        %v757 = vmul.f32 %v756, 1.442695
        %v758 = vpow.pop %v757
        %vm759 = vcmp.gt.s32.totalorder %v416, 3
        %v760 = vsel %vm759, 1, 0
        %v761 = vcvt.s32.f32 %v760
        %v762 = vmul.f32 %v758, %v761
        %764 = vset.pattern.permute.xlu0 0
        %765 = vperm.xlu0 %764, %v762
        %v766 = vpop.permute.xlu0 %765
        %v768 = vmul.f32 %v766, %v747
        %v769 = vadd.f32 %v681, %v768
        %v770 = vadd.f32 %v682, %v762
        %s771 = scalar_lea.vmem [#allocation2], 32
        %v772 = vld [vmem:[%s771] sm:$0xff]
        %774 = vrot.lane.b32.xlu0 %v747, 32
        %v775 = vpop.permute.xlu0 %774
        %v776 = vsel %vm337, %v775, 0
        %778 = vmatpush.msra.mxu0 0.0
        %779 = vmatpush.msra.mxu0 0.0
        %780 = vmatpush.msra.mxu0 0.0
        %781 = vmatpush.msra.mxu0 0.0
        %782 = vmatpush.msra.mxu0 0.0
        %783 = vmatpush.msra.mxu0 0.0
        %784 = vmatpush.msra.mxu0 0.0
        %785 = vmatpush.msra.mxu0 0.0
        %786 = vmatpush.msra.mxu0 0.0
        %787 = vmatpush.msra.mxu0 0.0
        %788 = vmatpush.msra.mxu0 0.0
        %789 = vmatpush.msra.mxu0 0.0
        %790 = vmatpush.msra.mxu0 %v414
        %791 = vmatpush.msra.mxu0 %v413
        %792 = vmatpush.msra.mxu0 %v412
        %793 = vmatpush.msra.mxu0 %v411
        %794 = vmatmul.f32.gmra.mxu0 %v776
        %v795 = vpop.f32.mrf.mxu0
        %v796 = vadd.f32 0.0, %v795
        %797 = vdwg.mxu0
        %v798 = vadd.f32 %v772, %v796
        %v799 = vxor.u32 %v798, 2147483648
        %v800 = vmul.f32 %v799, 1.442695
        %v801 = vpow.pop %v800
        %v802 = vadd.f32 %v801, 1.0
        %v803 = vrcp.pop %v802
        %v804 = vmul.f32 %v802, %v803
        %v805 = vsub.f32 1.0, %v804
        %v806 = vmul.f32 %v803, %v805
        %v807 = vadd.f32 %v803, %v806
        %vm808 = vweird.f32 %v802
        %vm809 = vweird.f32 %v803
        %vm810 = vmor %vm808, %vm809
        %v811 = vsel %vm810, %v803, %v807
        %v812 = vand.u32 2147483647, %v802
        %vm813 = vcmp.eq.f32.partialorder %v812, 8.507059e+37
        %v814 = vand.u32 %v802, 2147483648
        %v815 = vor.u32 1.1754944e-38, %v814
        %v816 = vsel %vm813, %v815, %v811
        %v817 = vmul.f32 1.0, %v816
        %v818 = vtanh.pop %v798
        %v819 = vmul.f32 %v817, %v741
        %821 = vrot.lane.b32.xlu0 %v818, 64
        %v822 = vpop.permute.xlu0 %821
        %v824 = vmul.f32 %v817, %v822
        %826 = vrot.lane.b32.xlu0 %v824, 32
        %v827 = vpop.permute.xlu0 %826
        %v829 = vadd.f32 %v819, %v827
        %v830 = vtanh.pop %v829
        %832 = vrot.lane.b32.xlu0 %v830, 64
        %v833 = vpop.permute.xlu0 %832
        %v835 = vmul.f32 %v817, %v833
        %v836 = vmul.f32 %v835, %v482
        %838 = vrot.lane.b32.xlu0 %v836, 32
        %v839 = vpop.permute.xlu0 %838
        %v841 = vsel %vm337, %v839, 0.0
        %842 = vadd.xlane.f32.xlu0 %v841
        %v843 = vpop.xlane.xlu0 %842
        %v844 = vtanh.pop %v843
        %v845 = vmul.f32 %v844, 1.442695
        %v846 = vpow.pop %v845
        %vm847 = vcmp.gt.s32.totalorder %v416, 4
        %v848 = vsel %vm847, 1, 0
        %v849 = vcvt.s32.f32 %v848
        %v850 = vmul.f32 %v846, %v849
        %852 = vset.pattern.permute.xlu0 0
        %853 = vperm.xlu0 %852, %v850
        %v854 = vpop.permute.xlu0 %853
        %v856 = vmul.f32 %v854, %v835
        %v857 = vadd.f32 %v769, %v856
        %v858 = vadd.f32 %v770, %v850
        %s859 = scalar_lea.vmem [#allocation2], 40
        %v860 = vld [vmem:[%s859] sm:$0xff]
        %862 = vrot.lane.b32.xlu0 %v835, 32
        %v863 = vpop.permute.xlu0 %862
        %v864 = vsel %vm337, %v863, 0
        %866 = vmatpush.msra.mxu0 0.0
        %867 = vmatpush.msra.mxu0 0.0
        %868 = vmatpush.msra.mxu0 0.0
        %869 = vmatpush.msra.mxu0 0.0
        %870 = vmatpush.msra.mxu0 0.0
        %871 = vmatpush.msra.mxu0 0.0
        %872 = vmatpush.msra.mxu0 0.0
        %873 = vmatpush.msra.mxu0 0.0
        %874 = vmatpush.msra.mxu0 0.0
        %875 = vmatpush.msra.mxu0 0.0
        %876 = vmatpush.msra.mxu0 0.0
        %877 = vmatpush.msra.mxu0 0.0
        %878 = vmatpush.msra.mxu0 %v414
        %879 = vmatpush.msra.mxu0 %v413
        %880 = vmatpush.msra.mxu0 %v412
        %881 = vmatpush.msra.mxu0 %v411
        %882 = vmatmul.f32.gmra.mxu0 %v864
        %v883 = vpop.f32.mrf.mxu0
        %v884 = vadd.f32 0.0, %v883
        %885 = vdwg.mxu0
        %v886 = vadd.f32 %v860, %v884
        %v887 = vxor.u32 %v886, 2147483648
        %v888 = vmul.f32 %v887, 1.442695
        %v889 = vpow.pop %v888
        %v890 = vadd.f32 %v889, 1.0
        %v891 = vrcp.pop %v890
        %v892 = vmul.f32 %v890, %v891
        %v893 = vsub.f32 1.0, %v892
        %v894 = vmul.f32 %v891, %v893
        %v895 = vadd.f32 %v891, %v894
        %vm896 = vweird.f32 %v890
        %vm897 = vweird.f32 %v891
        %vm898 = vmor %vm896, %vm897
        %v899 = vsel %vm898, %v891, %v895
        %v900 = vand.u32 2147483647, %v890
        %vm901 = vcmp.eq.f32.partialorder %v900, 8.507059e+37
        %v902 = vand.u32 %v890, 2147483648
        %v903 = vor.u32 1.1754944e-38, %v902
        %v904 = vsel %vm901, %v903, %v899
        %v905 = vmul.f32 1.0, %v904
        %v906 = vtanh.pop %v886
        %v907 = vmul.f32 %v905, %v829
        %909 = vrot.lane.b32.xlu0 %v906, 64
        %v910 = vpop.permute.xlu0 %909
        %v912 = vmul.f32 %v905, %v910
        %914 = vrot.lane.b32.xlu0 %v912, 32
        %v915 = vpop.permute.xlu0 %914
        %v917 = vadd.f32 %v907, %v915
        %v918 = vtanh.pop %v917
        %920 = vrot.lane.b32.xlu0 %v918, 64
        %v921 = vpop.permute.xlu0 %920
        %v923 = vmul.f32 %v905, %v921
        %v924 = vmul.f32 %v923, %v482
        %926 = vrot.lane.b32.xlu0 %v924, 32
        %v927 = vpop.permute.xlu0 %926
        %v929 = vsel %vm337, %v927, 0.0
        %930 = vadd.xlane.f32.xlu0 %v929
        %v931 = vpop.xlane.xlu0 %930
        %v932 = vtanh.pop %v931
        %v933 = vmul.f32 %v932, 1.442695
        %v934 = vpow.pop %v933
        %vm935 = vcmp.gt.s32.totalorder %v416, 5
        %v936 = vsel %vm935, 1, 0
        %v937 = vcvt.s32.f32 %v936
        %v938 = vmul.f32 %v934, %v937
        %940 = vset.pattern.permute.xlu0 0
        %941 = vperm.xlu0 %940, %v938
        %v942 = vpop.permute.xlu0 %941
        %v944 = vmul.f32 %v942, %v923
        %v945 = vadd.f32 %v857, %v944
        %v946 = vadd.f32 %v858, %v938
        %s947 = scalar_lea.vmem [#allocation2], 48
        %v948 = vld [vmem:[%s947] sm:$0xff]
        %950 = vrot.lane.b32.xlu0 %v923, 32
        %v951 = vpop.permute.xlu0 %950
        %v952 = vsel %vm337, %v951, 0
        %954 = vmatpush.msra.mxu0 0.0
        %955 = vmatpush.msra.mxu0 0.0
        %956 = vmatpush.msra.mxu0 0.0
        %957 = vmatpush.msra.mxu0 0.0
        %958 = vmatpush.msra.mxu0 0.0
        %959 = vmatpush.msra.mxu0 0.0
        %960 = vmatpush.msra.mxu0 0.0
        %961 = vmatpush.msra.mxu0 0.0
        %962 = vmatpush.msra.mxu0 0.0
        %963 = vmatpush.msra.mxu0 0.0
        %964 = vmatpush.msra.mxu0 0.0
        %965 = vmatpush.msra.mxu0 0.0
        %966 = vmatpush.msra.mxu0 %v414
        %967 = vmatpush.msra.mxu0 %v413
        %968 = vmatpush.msra.mxu0 %v412
        %969 = vmatpush.msra.mxu0 %v411
        %970 = vmatmul.f32.gmra.mxu0 %v952
        %v971 = vpop.f32.mrf.mxu0
        %v972 = vadd.f32 0.0, %v971
        %973 = vdwg.mxu0
        %v974 = vadd.f32 %v948, %v972
        %v975 = vxor.u32 %v974, 2147483648
        %v976 = vmul.f32 %v975, 1.442695
        %v977 = vpow.pop %v976
        %v978 = vadd.f32 %v977, 1.0
        %v979 = vrcp.pop %v978
        %v980 = vmul.f32 %v978, %v979
        %v981 = vsub.f32 1.0, %v980
        %v982 = vmul.f32 %v979, %v981
        %v983 = vadd.f32 %v979, %v982
        %vm984 = vweird.f32 %v978
        %vm985 = vweird.f32 %v979
        %vm986 = vmor %vm984, %vm985
        %v987 = vsel %vm986, %v979, %v983
        %v988 = vand.u32 2147483647, %v978
        %vm989 = vcmp.eq.f32.partialorder %v988, 8.507059e+37
        %v990 = vand.u32 %v978, 2147483648
        %v991 = vor.u32 1.1754944e-38, %v990
        %v992 = vsel %vm989, %v991, %v987
        %v993 = vmul.f32 1.0, %v992
        %v994 = vtanh.pop %v974
        %v995 = vmul.f32 %v993, %v917
        %997 = vrot.lane.b32.xlu0 %v994, 64
        %v998 = vpop.permute.xlu0 %997
        %v1000 = vmul.f32 %v993, %v998
        %1002 = vrot.lane.b32.xlu0 %v1000, 32
        %v1003 = vpop.permute.xlu0 %1002
        %v1005 = vadd.f32 %v995, %v1003
        %v1006 = vtanh.pop %v1005
        %1008 = vrot.lane.b32.xlu0 %v1006, 64
        %v1009 = vpop.permute.xlu0 %1008
        %v1011 = vmul.f32 %v993, %v1009
        %v1012 = vmul.f32 %v1011, %v482
        %1014 = vrot.lane.b32.xlu0 %v1012, 32
        %v1015 = vpop.permute.xlu0 %1014
        %v1017 = vsel %vm337, %v1015, 0.0
        %1018 = vadd.xlane.f32.xlu0 %v1017
        %v1019 = vpop.xlane.xlu0 %1018
        %v1020 = vtanh.pop %v1019
        %v1021 = vmul.f32 %v1020, 1.442695
        %v1022 = vpow.pop %v1021
        %vm1023 = vcmp.gt.s32.totalorder %v416, 6
        %v1024 = vsel %vm1023, 1, 0
        %v1025 = vcvt.s32.f32 %v1024
        %v1026 = vmul.f32 %v1022, %v1025
        %1028 = vset.pattern.permute.xlu0 0
        %1029 = vperm.xlu0 %1028, %v1026
        %v1030 = vpop.permute.xlu0 %1029
        %v1032 = vmul.f32 %v1030, %v1011
        %v1033 = vadd.f32 %v945, %v1032
        %v1034 = vadd.f32 %v946, %v1026
        %s1035 = scalar_lea.vmem [#allocation2], 56
        %v1036 = vld [vmem:[%s1035] sm:$0xff]
        %1038 = vrot.lane.b32.xlu0 %v1011, 32
        %v1039 = vpop.permute.xlu0 %1038
        %v1040 = vsel %vm337, %v1039, 0
        %1042 = vmatpush.msra.mxu0 0.0
        %1043 = vmatpush.msra.mxu0 0.0
        %1044 = vmatpush.msra.mxu0 0.0
        %1045 = vmatpush.msra.mxu0 0.0
        %1046 = vmatpush.msra.mxu0 0.0
        %1047 = vmatpush.msra.mxu0 0.0
        %1048 = vmatpush.msra.mxu0 0.0
        %1049 = vmatpush.msra.mxu0 0.0
        %1050 = vmatpush.msra.mxu0 0.0
        %1051 = vmatpush.msra.mxu0 0.0
        %1052 = vmatpush.msra.mxu0 0.0
        %1053 = vmatpush.msra.mxu0 0.0
        %1054 = vmatpush.msra.mxu0 %v414
        %1055 = vmatpush.msra.mxu0 %v413
        %1056 = vmatpush.msra.mxu0 %v412
        %1057 = vmatpush.msra.mxu0 %v411
        %1058 = vmatmul.f32.gmra.mxu0 %v1040
        %v1059 = vpop.f32.mrf.mxu0
        %v1060 = vadd.f32 0.0, %v1059
        %1061 = vdwg.mxu0
        %v1062 = vadd.f32 %v1036, %v1060
        %v1063 = vxor.u32 %v1062, 2147483648
        %v1064 = vmul.f32 %v1063, 1.442695
        %v1065 = vpow.pop %v1064
        %v1066 = vadd.f32 %v1065, 1.0
        %v1067 = vrcp.pop %v1066
        %v1068 = vmul.f32 %v1066, %v1067
        %v1069 = vsub.f32 1.0, %v1068
        %v1070 = vmul.f32 %v1067, %v1069
        %v1071 = vadd.f32 %v1067, %v1070
        %vm1072 = vweird.f32 %v1066
        %vm1073 = vweird.f32 %v1067
        %vm1074 = vmor %vm1072, %vm1073
        %v1075 = vsel %vm1074, %v1067, %v1071
        %v1076 = vand.u32 2147483647, %v1066
        %vm1077 = vcmp.eq.f32.partialorder %v1076, 8.507059e+37
        %v1078 = vand.u32 %v1066, 2147483648
        %v1079 = vor.u32 1.1754944e-38, %v1078
        %v1080 = vsel %vm1077, %v1079, %v1075
        %v1081 = vmul.f32 1.0, %v1080
        %v1082 = vtanh.pop %v1062
        %v1083 = vmul.f32 %v1081, %v1005
        %1085 = vrot.lane.b32.xlu0 %v1082, 64
        %v1086 = vpop.permute.xlu0 %1085
        %v1088 = vmul.f32 %v1081, %v1086
        %1090 = vrot.lane.b32.xlu0 %v1088, 32
        %v1091 = vpop.permute.xlu0 %1090
        %v1093 = vadd.f32 %v1083, %v1091
        %v1094 = vtanh.pop %v1093
        %1096 = vrot.lane.b32.xlu0 %v1094, 64
        %v1097 = vpop.permute.xlu0 %1096
        %v1099 = vmul.f32 %v1081, %v1097
        %v1100 = vmul.f32 %v1099, %v482
        %1102 = vrot.lane.b32.xlu0 %v1100, 32
        %v1103 = vpop.permute.xlu0 %1102
        %v1105 = vsel %vm337, %v1103, 0.0
        %1106 = vadd.xlane.f32.xlu0 %v1105
        %v1107 = vpop.xlane.xlu0 %1106
        %v1108 = vtanh.pop %v1107
        %v1109 = vmul.f32 %v1108, 1.442695
        %v1110 = vpow.pop %v1109
        %vm1111 = vcmp.gt.s32.totalorder %v416, 7
        %v1112 = vsel %vm1111, 1, 0
        %v1113 = vcvt.s32.f32 %v1112
        %v1114 = vmul.f32 %v1110, %v1113
        %1116 = vset.pattern.permute.xlu0 0
        %1117 = vperm.xlu0 %1116, %v1114
        %v1118 = vpop.permute.xlu0 %1117
        %v1120 = vmul.f32 %v1118, %v1099
        %v1121 = vadd.f32 %v1033, %v1120
        %v1122 = vadd.f32 %v1034, %v1114
        %v1123 = vrcp.pop %v1122
        %v1124 = vmul.f32 %v1122, %v1123
        %v1125 = vsub.f32 2.0, %v1124
        %v1126 = vmul.f32 %v1123, %v1125
        %1128 = vset.pattern.permute.xlu0 0
        %1129 = vperm.xlu0 %1128, %v1126
        %v1130 = vpop.permute.xlu0 %1129
        %v1132 = vmul.f32 %v1121, %v1130
        %1134 = vrot.lane.b32.xlu0 %v1132, 32
        %v1135 = vpop.permute.xlu0 %1134
        %1137 = vst.msk [vmem:[%s316] sm:$0xff] %vm337, %v1135
        %s1138 = sand.u32 %s168, 1
        %s1139 = scalar_lea.sflag [#allocation5], %s1138
        %s1140 = sand.u32 %s168, 1
        %s1141 = smul.addr %s1140, 8
        %s1142 = scalar_lea.vmem [#allocation9], %s1141
        // Predicated region
        $region57: #{tpu_custom_call.1} parent=43 // pred_check
          %p1143 = pneg %p178
        $region58: #{tpu_custom_call.1} parent=43 // pred_check_branch
          %1145 = sbr.rel (%p1143) target = $region60
        $region59: #{tpu_custom_call.1} parent=43 // pred_region
          %1147 = vsyncadd %s1139, 0
          %s1148 = smul.addr %s24, 8
          %s1149 = scalar_lea.hbm %s6, %s1148
          %s1151 = sshll.u32 %s1142, 4
          %s1152 = int_to_ptr.vmem [resolvable:$true] %s1151
          %s1153 = sshll.u32 %s1149, 4
          %s1154 = int_to_ptr.hbm [resolvable:$true] %s1153
          %1156 = dma.vmem_to_hbm [thread:$0]  %s1152, 128, %s1154, %s1139
        $region60: #{tpu_custom_call.1} parent=43 // pred_fallthru
          _
      $region44: #{tpu_custom_call.1} parent=5 // pred_fallthru
        _
      %p1157 = scmp.le.s32.totalorder 2, %s19
      // Predicated region
      $region61: #{tpu_custom_call.1} parent=5 // pred_check
        %p1158 = pneg %p1157
      $region62: #{tpu_custom_call.1} parent=5 // pred_check_branch
        %1160 = sbr.rel (%p1158) target = $region64
      $region63: #{tpu_custom_call.1} parent=5 // pred_region
        %s1161 = ssub.s32 %s19, 2
        // Predicated region
        $region65: #{tpu_custom_call.1} parent=63 // pred_check
          %p1162 = pneg %p184
        $region66: #{tpu_custom_call.1} parent=63 // pred_check_branch
          %1164 = sbr.rel (%p1162) target = $region68
        $region67: #{tpu_custom_call.1} parent=63 // pred_region
          %s1165 = sand.u32 %s169, 1
          %s1166 = scalar_lea.sflag [#allocation5], %s1165
          %s1167 = sand.u32 %s169, 1
          %s1168 = smul.addr %s1167, 8
          %s1169 = scalar_lea.vmem [#allocation9], %s1168
          %1171 = dma.done %s1166, 128
        $region68: #{tpu_custom_call.1} parent=63 // pred_fallthru
          _
      $region64: #{tpu_custom_call.1} parent=5 // pred_fallthru
        _
    $region6: #{tpu_custom_call.1} parent=1 // loop_footer
      %s23 = sadd.s32 1, %s19
    $region7: #{tpu_custom_call.1} parent=1 // loop_footer_branch
      %18 = sbr.rel target = $region3
    $region8: #{tpu_custom_call.1} parent=1 // loop_exit
      _
    %1172 = vsyncpa [#allocation4], 1
    %s1173 = scalar_lea.sflag [#allocation4], 1
    %1174 = vsyncpa %s1173, 1
    %1175 = vsyncpa [#allocation7], 1
    %1176 = vsyncpa [#allocation5], 1
    %s1177 = scalar_lea.sflag [#allocation5], 1
    %1178 = vsyncpa %s1177, 1

</llo_original>
